<compile_context>
chip_gen: v6e
topology: v6e:2x2x1
jax: 0.10.0
libtpu: 0.0.40
codegen_flags: <defaults>
</compile_context>

<pallas_src>
import functools

import jax
import jax.numpy as jnp
from jax import lax
from jax.experimental import pallas as pl
from jax.experimental.pallas import tpu as pltpu

K_DISP = 8                   # max displacement (k in the PyTorch code)
KW = 2 * K_DISP + 1          # 17
D = KW * KW                  # 289 displacement channels
TOPK = 256


# ---------------------------------------------------------------------------
# Kernel
# ---------------------------------------------------------------------------
def _local_corr_mask_kernel(curr_ref, pre_ref, mask_ref, f_ref, b_ref, *,
                            dh_per_step, dw_groups, unroll_c):
    """Local correlation (+-8 px window) + foreground/background masking.

    Grid step (b, ht, dc) covers
      * spatial rows      [ht * tile_H, (ht + 1) * tile_H)
      * displacement rows [dc * dh_per_step * 17, (dc + 1) * dh_per_step * 17)

    Block shapes seen by the kernel:
      curr_ref : (C, tile_H, W)            L2-normalized current frame
      pre_ref  : (C, tile_H + 2k, W + 2k)  halo'd, reflect-padded previous
      mask_ref : (tile_H + 2k, W + 2k)     pooled mask, zero-padded by k
      f_ref    : (dh_per_step * 17, tile_H, W)
      b_ref    : (dh_per_step * 17, tile_H, W)
    """
    C, TH, W = curr_ref.shape
    dh_base = pl.program_id(2) * dh_per_step

    @pl.loop(0, dh_per_step)
    def _(dh_local):
        # Clamp so a ragged last D-chunk just recomputes dh = 16; those
        # duplicate rows land past D = 289 and are sliced off in the wrapper.
        dh = jnp.minimum(dh_base + dh_local, 2 * K_DISP)
        msk = mask_ref[pl.ds(dh, TH), :]                      # (TH, W + 2k)

        for g_lo, g_hi in dw_groups:                          # static python
            dws = tuple(range(g_lo, g_hi))

            # Channel loop OUTER, dw loop INNER: curr[c] and the pre slab are
            # loaded exactly once per (c, dh) and the per-dw f32 accumulators
            # stay resident (review item: removes ~17x redundant load traffic).
            def c_body(c, accs, _dws=dws):
                cc = curr_ref[c]                              # (TH, W)
                ps = pre_ref[c, pl.ds(dh, TH), :]             # (TH, W + 2k)
                return tuple(
                    acc + (cc * ps[:, dw:dw + W]).astype(jnp.float32)
                    for acc, dw in zip(accs, _dws))

            init = tuple(jnp.zeros((TH, W), jnp.float32) for _ in dws)
            if unroll_c:
                accs = lax.fori_loop(0, C, c_body, init, unroll=True)
            else:
                accs = lax.fori_loop(0, C, c_body, init)

            # TODO(synk): for C >= ~32 this contraction should go to the MXU
            # (per-row (W, C) @ (C, W+2k) Gram band) and the stores should be
            # packed lane-dense; needs an im2col / diagonal-band rewrite.
            for acc, dw in zip(accs, dws):
                f = acc * msk[:, dw:dw + W]                   # co * mask
                d = dh_local * KW + dw                        # row inside block
                f_ref[d] = f.astype(f_ref.dtype)
                b_ref[d] = (acc - f).astype(b_ref.dtype)      # co * (1 - mask)


# ---------------------------------------------------------------------------
# Plain-JAX glue
# ---------------------------------------------------------------------------
def _adaptive_max_pool2d(x, out_h, out_w):
    """PyTorch-style adaptive_max_pool2d for NCHW input (plain JAX glue)."""
    _, _, hin, win = x.shape
    if (hin, win) == (out_h, out_w):
        return x
    if hin % out_h == 0 and win % out_w == 0:
        kh, kw = hin // out_h, win // out_w
        init = jnp.asarray(-jnp.inf, x.dtype)
        return lax.reduce_window(x, init, lax.max,
                                 (1, 1, kh, kw), (1, 1, kh, kw), "VALID")
    # general (non-divisible) PyTorch adaptive pooling fallback
    rows = []
    for i in range(out_h):
        hs, he = (i * hin) // out_h, -(-((i + 1) * hin) // out_h)
        cols = []
        for j in range(out_w):
            ws, we = (j * win) // out_w, -(-((j + 1) * win) // out_w)
            cols.append(jnp.max(x[:, :, hs:he, ws:we], axis=(2, 3)))
        rows.append(jnp.stack(cols, axis=-1))
    return jnp.stack(rows, axis=-2)


def _vmem_limit_bytes():
    """Generation-aware VMEM limit: ~96 MiB on v5e/v6e, ~48 MiB on v7x."""
    try:
        cap = int(pltpu.get_tpu_info().vmem_capacity_bytes)
    except Exception:
        cap = 64 * 1024 * 1024            # conservative (v7x-sized) fallback
    return min(cap * 3 // 4, 100 * 1024 * 1024)


def _choose_tiling(B, C, H, W, in_isz, out_isz, vmem_budget):
    """Pick (tile_H, dh_per_step, single_buffer_inputs) from actual block bytes."""
    k2 = 2 * K_DISP
    sub = 8 if (in_isz >= 4 and out_isz >= 4) else 16      # bf16 packs 16 rows
    cands = sorted({t for t in range(sub, H + 1, sub) if H % t == 0} | {H},
                   reverse=True)
    # v7x has 2 TensorCores sharded over "parallel" grid axes: when B == 1 the
    # H axis must contribute at least 2 independent steps.
    if B == 1:
        smaller = [t for t in cands if t < H]
        if smaller:
            cands = smaller
    # Prefer tiles whose 17 f32 dw-accumulators (+ operands) fit the vreg file,
    # so the channel loop keeps all 17 dw windows resident (no redundant loads).
    pref = [t for t in cands if (KW + 4) * t * W * 4 <= 120 * 1024]
    cands = pref + [t for t in cands if t not in pref]

    def block_bytes(th, dh_per):
        in_blk = (C * th * W * in_isz                        # curr
                  + C * (th + k2) * (W + k2) * in_isz        # pre (halo'd)
                  + (th + k2) * (W + k2) * 4)                # mask
        out_blk = 2 * dh_per * KW * th * W * out_isz         # f + b
        return in_blk, out_blk

    for th in cands:
        for dh_per in (KW, 9, 6, 3, 2, 1):                   # gradual, no cliff
            in_blk, out_blk = block_bytes(th, dh_per)
            if 2 * in_blk + 2 * out_blk <= vmem_budget:
                return th, dh_per, False
            if in_blk + 2 * out_blk <= vmem_budget:          # single-buffer ins
                return th, dh_per, True
    return cands[-1], 1, True


# ---------------------------------------------------------------------------
# Forward wrapper (= Local.forward(pre, curr, mask, mode=0), no CUDA corr)
# ---------------------------------------------------------------------------
def local_forward(pre, curr, mask, *, k=K_DISP,
                  compute_dtype=jnp.float32, out_dtype=jnp.float32,
                  _force_tiles=None):
    """compute_dtype / out_dtype: float32 (default, matches the f32 reference
    exactly) or bfloat16.  bf16 halves DMA bytes and is a VALU win on v6e/v7x
    only -- v5e has no bf16 VPU path, keep float32 there; bf16 can also flip
    values near the top-256 cutoff.  `_force_tiles=(tile_H, dh_per_step)` is a
    test/tuning override for the static tiling choice."""
    if k != K_DISP:
        raise ValueError("only k=8 (the module's hard-coded displacement) is supported")
    pre = pre.astype(jnp.float32)
    curr = curr.astype(jnp.float32)
    mask = mask.astype(jnp.float32)
    B, C, H, W = pre.shape
    if H <= k or W <= k:
        raise ValueError(f"reflect padding by {k} needs H > {k} and W > {k}, got {(H, W)}")

    # F.normalize (p=2, dim=1, eps=1e-12)
    def l2n(x):
        n = jnp.sqrt(jnp.sum(x * x, axis=1, keepdims=True))
        return x / jnp.maximum(n, 1e-12)

    pre_pad = jnp.pad(l2n(pre), ((0, 0), (0, 0), (k, k), (k, k)), mode="reflect")
    curr_n = l2n(curr).astype(compute_dtype)
    pre_pad = pre_pad.astype(compute_dtype)

    # mask: adaptive max pool to (H, W), then zero-pad by k
    mask_p = _adaptive_max_pool2d(mask, H, W)                    # (B, 1, H, W)
    mask_pad = jnp.pad(mask_p[:, 0], ((0, 0), (k, k), (k, k)))   # (B, H+2k, W+2k)

    # --- static tiling decisions -------------------------------------------
    in_isz = jnp.dtype(compute_dtype).itemsize
    out_isz = jnp.dtype(out_dtype).itemsize
    vmem_limit = _vmem_limit_bytes()
    if _force_tiles is None:
        tile_h, dh_per_step, single_buf = _choose_tiling(
            B, C, H, W, in_isz, out_isz, int(vmem_limit * 0.6))
    else:
        tile_h, dh_per_step = _force_tiles
        single_buf = False
    assert H % tile_h == 0 and (tile_h % 8 == 0 or tile_h == H), (tile_h, H)
    n_ht = H // tile_h
    n_dc = -(-KW // dh_per_step)
    ch = dh_per_step * KW                  # displacement rows per grid step
    d_pad = n_dc * ch                      # >= 289; extra rows sliced off below

    # dw grouping: keep the resident accumulators within ~112 KiB of vregs.
    g = max(1, min(KW, (112 * 1024) // (4 * tile_h * W)))
    dw_groups = tuple((s, min(s + g, KW)) for s in range(0, KW, g))

    # Pre-gather the +2k halo per H-tile so every block stays block-granular
    # (BlockSpec auto-pipelining keeps working and v7x's 64 MiB VMEM is safe).
    pre_tiles = jnp.stack(
        [pre_pad[:, :, i * tile_h:i * tile_h + tile_h + 2 * k, :]
         for i in range(n_ht)], axis=1)     # (B, n_ht, C, tile_h+2k, W+2k)
    mask_tiles = jnp.stack(
        [mask_pad[:, i * tile_h:i * tile_h + tile_h + 2 * k, :]
         for i in range(n_ht)], axis=1)     # (B, n_ht, tile_h+2k, W+2k)

    def in_spec(block_shape, index_map):
        if single_buf:
            # Inputs are revisited across the D axis (resident, not streamed):
            # single-buffer them when VMEM is tight.
            return pl.BlockSpec(block_shape, index_map,
                                pipeline_mode=pl.Buffered(1))
        return pl.BlockSpec(block_shape, index_map)

    kernel = functools.partial(_local_corr_mask_kernel,
                               dh_per_step=dh_per_step,
                               dw_groups=dw_groups,
                               unroll_c=C <= 8)

    f_all, b_all = pl.pallas_call(
        kernel,
        out_shape=(
            jax.ShapeDtypeStruct((B, d_pad, H, W), out_dtype),
            jax.ShapeDtypeStruct((B, d_pad, H, W), out_dtype),
        ),
        grid=(B, n_ht, n_dc),
        in_specs=[
            in_spec((None, C, tile_h, W), lambda b, t, d: (b, 0, t, 0)),
            in_spec((None, None, C, tile_h + 2 * k, W + 2 * k),
                    lambda b, t, d: (b, t, 0, 0, 0)),
            in_spec((None, None, tile_h + 2 * k, W + 2 * k),
                    lambda b, t, d: (b, t, 0, 0)),
        ],
        out_specs=(
            pl.BlockSpec((None, ch, tile_h, W), lambda b, t, d: (b, d, t, 0)),
            pl.BlockSpec((None, ch, tile_h, W), lambda b, t, d: (b, d, t, 0)),
        ),
        compiler_params=pltpu.CompilerParams(
            dimension_semantics=("parallel", "parallel", "parallel"),
            vmem_limit_bytes=vmem_limit,
        ),
    )(curr_n, pre_tiles, mask_tiles)

    if d_pad != D:
        f_all = f_all[:, :D]
        b_all = b_all[:, :D]

    # TODO(synk): the per-pixel 256-of-289 selection (torch.topk(256, 1)[0])
    # and the D-last relayout it needs have no clean in-kernel Pallas form yet;
    # done with lax.top_k in glue (same sorted values as the PyTorch reference).
    def topk_ch(x):
        xt = jnp.transpose(x, (0, 2, 3, 1))          # (B, H, W, D)
        vals = lax.top_k(xt, TOPK)[0]                # sorted descending
        return jnp.transpose(vals, (0, 3, 1, 2))     # (B, 256, H, W)

    return topk_ch(f_all), topk_ch(b_all)


# ---------------------------------------------------------------------------
# Pure-JAX reference (direct transcription of the PyTorch module)
# ---------------------------------------------------------------------------
def local_forward_ref(pre, curr, mask, *, k=K_DISP):
    pre = pre.astype(jnp.float32)
    curr = curr.astype(jnp.float32)

    def l2n(x):
        n = jnp.sqrt(jnp.sum(x * x, axis=1, keepdims=True))
        return x / jnp.maximum(n, 1e-12)

    pre_n, curr_n = l2n(pre), l2n(curr)
    B, C, H, W = pre.shape
    pre_pad = jnp.pad(pre_n, ((0, 0), (0, 0), (k, k), (k, k)), mode="reflect")
    m = _adaptive_max_pool2d(mask.astype(jnp.float32), H, W)
    m_pad = jnp.pad(m[:, 0], ((0, 0), (k, k), (k, k)))
    cos, ms = [], []
    for dh in range(KW):
        for dw in range(KW):
            win = pre_pad[:, :, dh:dh + H, dw:dw + W]
            cos.append(jnp.sum(curr_n * win, axis=1))
            ms.append(m_pad[:, dh:dh + H, dw:dw + W])
    co = jnp.stack(cos, axis=1)                      # (B, 289, H, W)
    mb = jnp.stack(ms, axis=1)
    f = co * mb
    b = co * (1.0 - mb)

    def topk_ch(x):
        xt = jnp.transpose(x, (0, 2, 3, 1))
        return jnp.transpose(lax.top_k(xt, TOPK)[0], (0, 3, 1, 2))

    return topk_ch(f), topk_ch(b)


# ---------------------------------------------------------------------------
if __name__ == "__main__":
    import numpy as np

    def run_case(case_id, B, C, H, W, mask_hw=None, force_tiles=None):
        k1, k2, k3 = jax.random.split(
            jax.random.fold_in(jax.random.PRNGKey(0), case_id), 3)
        mh, mw = mask_hw if mask_hw is not None else (H, W)
        pre = jax.random.normal(k1, (B, C, H, W), dtype=jnp.float32)
        curr = jax.random.normal(k2, (B, C, H, W), dtype=jnp.float32)
        mask = (jax.random.uniform(k3, (B, 1, mh, mw)) > 0.5).astype(jnp.float32)

        fwd = jax.jit(functools.partial(local_forward, _force_tiles=force_tiles))
        f, b = fwd(pre, curr, mask)
        jax.block_until_ready((f, b))
        assert f.shape == (B, TOPK, H, W), f.shape
        assert b.shape == (B, TOPK, H, W), b.shape

        f_ref, b_ref = jax.jit(local_forward_ref)(pre, curr, mask)
        np.testing.assert_allclose(np.asarray(f), np.asarray(f_ref),
                                   rtol=1e-5, atol=1e-5)
        np.testing.assert_allclose(np.asarray(b), np.asarray(b_ref),
                                   rtol=1e-5, atol=1e-5)

    # primary small case (matches the module's typical toy call)
    run_case(1, B=2, C=4, H=16, W=16)
    # B=1 -> the tiler must produce >= 2 parallel H-tiles (v7x dual-TC rule);
    # also exercises the halo gather and the reduce_window mask pooling path.
    run_case(2, B=1, C=8, H=24, W=20, mask_hw=(48, 40))
    # force D-chunking (dh_per_step=6 -> ragged/padded tail + clamp) and a
    # rolled (non-unrolled) channel loop with the 17 resident accumulators.
    run_case(3, B=1, C=12, H=16, W=16, force_tiles=(8, 6))

    print("KERNEL_OK")
</pallas_src>

<mosaic_0001>
module attributes {stable_mosaic.version = 11 : i64} {
  func.func @_local_corr_mask_kernel(%arg0: i32, %arg1: i32, %arg2: i32, %arg3: memref<1x4x16x16xf32, #tpu.memory_space<vmem>>, %arg4: memref<1x1x4x32x32xf32, #tpu.memory_space<vmem>>, %arg5: memref<1x1x32x32xf32, #tpu.memory_space<vmem>>, %arg6: memref<1x289x16x16xf32, #tpu.memory_space<vmem>>, %arg7: memref<1x289x16x16xf32, #tpu.memory_space<vmem>>) attributes {dimension_semantics = [#tpu.dimension_semantics<parallel>, #tpu.dimension_semantics<parallel>, #tpu.dimension_semantics<parallel>], iteration_bounds = array<i64: 2, 1, 1>, scalar_prefetch = 0 : i64, scratch_operands = 0 : i64, tpu.core_type = #tpu.core_type<tc>, window_params = [{transform_indices = @transform_0, window_bounds = array<i64: 1, 4, 16, 16>}, {transform_indices = @transform_1, window_bounds = array<i64: 1, 1, 4, 32, 32>}, {transform_indices = @transform_2, window_bounds = array<i64: 1, 1, 32, 32>}, {transform_indices = @transform_3, window_bounds = array<i64: 1, 289, 16, 16>}, {transform_indices = @transform_4, window_bounds = array<i64: 1, 289, 16, 16>}]} {
    %c17_i32 = arith.constant 17 : i32
    %0 = arith.muli %arg2, %c17_i32 : i32
    %c0_i32 = arith.constant 0 : i32
    %c17_i32_0 = arith.constant 17 : i32
    %1 = arith.addi %c0_i32, %c17_i32_0 : i32
    %c1_i32 = arith.constant 1 : i32
    scf.for %arg8 = %c0_i32 to %1 step %c1_i32  : i32 {
      %c1_i32_2 = arith.constant 1 : i32
      %2 = arith.muli %arg8, %c1_i32_2 : i32
      %c0_i32_3 = arith.constant 0 : i32
      %3 = arith.addi %c0_i32_3, %2 : i32
      %4 = arith.addi %0, %3 : i32
      %c16_i32 = arith.constant 16 : i32
      %5 = arith.minsi %4, %c16_i32 : i32
      %c0 = arith.constant 0 : index
      %c0_4 = arith.constant 0 : index
      %6 = arith.index_cast %5 : i32 to index
      %c0_5 = arith.constant 0 : index
      %7 = vector.load %arg5[%c0, %c0_4, %6, %c0_5] : memref<1x1x32x32xf32, #tpu.memory_space<vmem>>, vector<1x1x16x32xf32>
      %8 = vector.shape_cast %7 : vector<1x1x16x32xf32> to vector<16x32xf32>
      %cst = arith.constant 0.000000e+00 : f32
      %9 = vector.broadcast %cst : f32 to vector<16x16xf32>
      %cst_6 = arith.constant 0.000000e+00 : f32
      %10 = vector.broadcast %cst_6 : f32 to vector<16x16xf32>
      %cst_7 = arith.constant 0.000000e+00 : f32
      %11 = vector.broadcast %cst_7 : f32 to vector<16x16xf32>
      %cst_8 = arith.constant 0.000000e+00 : f32
      %12 = vector.broadcast %cst_8 : f32 to vector<16x16xf32>
      %cst_9 = arith.constant 0.000000e+00 : f32
      %13 = vector.broadcast %cst_9 : f32 to vector<16x16xf32>
      %cst_10 = arith.constant 0.000000e+00 : f32
      %14 = vector.broadcast %cst_10 : f32 to vector<16x16xf32>
      %cst_11 = arith.constant 0.000000e+00 : f32
      %15 = vector.broadcast %cst_11 : f32 to vector<16x16xf32>
      %cst_12 = arith.constant 0.000000e+00 : f32
      %16 = vector.broadcast %cst_12 : f32 to vector<16x16xf32>
      %cst_13 = arith.constant 0.000000e+00 : f32
      %17 = vector.broadcast %cst_13 : f32 to vector<16x16xf32>
      %cst_14 = arith.constant 0.000000e+00 : f32
      %18 = vector.broadcast %cst_14 : f32 to vector<16x16xf32>
      %cst_15 = arith.constant 0.000000e+00 : f32
      %19 = vector.broadcast %cst_15 : f32 to vector<16x16xf32>
      %cst_16 = arith.constant 0.000000e+00 : f32
      %20 = vector.broadcast %cst_16 : f32 to vector<16x16xf32>
      %cst_17 = arith.constant 0.000000e+00 : f32
      %21 = vector.broadcast %cst_17 : f32 to vector<16x16xf32>
      %cst_18 = arith.constant 0.000000e+00 : f32
      %22 = vector.broadcast %cst_18 : f32 to vector<16x16xf32>
      %cst_19 = arith.constant 0.000000e+00 : f32
      %23 = vector.broadcast %cst_19 : f32 to vector<16x16xf32>
      %cst_20 = arith.constant 0.000000e+00 : f32
      %24 = vector.broadcast %cst_20 : f32 to vector<16x16xf32>
      %cst_21 = arith.constant 0.000000e+00 : f32
      %25 = vector.broadcast %cst_21 : f32 to vector<16x16xf32>
      %c0_i32_22 = arith.constant 0 : i32
      %c0_23 = arith.constant 0 : index
      %26 = arith.index_cast %c0_i32_22 : i32 to index
      %c0_24 = arith.constant 0 : index
      %c0_25 = arith.constant 0 : index
      %27 = vector.load %arg3[%c0_23, %26, %c0_24, %c0_25] : memref<1x4x16x16xf32, #tpu.memory_space<vmem>>, vector<1x1x16x16xf32>
      %28 = vector.shape_cast %27 : vector<1x1x16x16xf32> to vector<16x16xf32>
      %c0_26 = arith.constant 0 : index
      %c0_27 = arith.constant 0 : index
      %29 = arith.index_cast %c0_i32_22 : i32 to index
      %30 = arith.index_cast %5 : i32 to index
      %c0_28 = arith.constant 0 : index
      %31 = vector.load %arg4[%c0_26, %c0_27, %29, %30, %c0_28] : memref<1x1x4x32x32xf32, #tpu.memory_space<vmem>>, vector<1x1x1x16x32xf32>
      %32 = vector.shape_cast %31 : vector<1x1x1x16x32xf32> to vector<16x32xf32>
      %33 = vector.extract_strided_slice %32 {offsets = [0, 0], sizes = [16, 16], strides = [1, 1]} : vector<16x32xf32> to vector<16x16xf32>
      %34 = arith.mulf %28, %33 : vector<16x16xf32>
      %35 = arith.addf %9, %34 : vector<16x16xf32>
      %36 = vector.extract_strided_slice %32 {offsets = [0, 1], sizes = [16, 16], strides = [1, 1]} : vector<16x32xf32> to vector<16x16xf32>
      %37 = arith.mulf %28, %36 : vector<16x16xf32>
      %38 = arith.addf %10, %37 : vector<16x16xf32>
      %39 = vector.extract_strided_slice %32 {offsets = [0, 2], sizes = [16, 16], strides = [1, 1]} : vector<16x32xf32> to vector<16x16xf32>
      %40 = arith.mulf %28, %39 : vector<16x16xf32>
      %41 = arith.addf %11, %40 : vector<16x16xf32>
      %42 = vector.extract_strided_slice %32 {offsets = [0, 3], sizes = [16, 16], strides = [1, 1]} : vector<16x32xf32> to vector<16x16xf32>
      %43 = arith.mulf %28, %42 : vector<16x16xf32>
      %44 = arith.addf %12, %43 : vector<16x16xf32>
      %45 = vector.extract_strided_slice %32 {offsets = [0, 4], sizes = [16, 16], strides = [1, 1]} : vector<16x32xf32> to vector<16x16xf32>
      %46 = arith.mulf %28, %45 : vector<16x16xf32>
      %47 = arith.addf %13, %46 : vector<16x16xf32>
      %48 = vector.extract_strided_slice %32 {offsets = [0, 5], sizes = [16, 16], strides = [1, 1]} : vector<16x32xf32> to vector<16x16xf32>
      %49 = arith.mulf %28, %48 : vector<16x16xf32>
      %50 = arith.addf %14, %49 : vector<16x16xf32>
      %51 = vector.extract_strided_slice %32 {offsets = [0, 6], sizes = [16, 16], strides = [1, 1]} : vector<16x32xf32> to vector<16x16xf32>
      %52 = arith.mulf %28, %51 : vector<16x16xf32>
      %53 = arith.addf %15, %52 : vector<16x16xf32>
      %54 = vector.extract_strided_slice %32 {offsets = [0, 7], sizes = [16, 16], strides = [1, 1]} : vector<16x32xf32> to vector<16x16xf32>
      %55 = arith.mulf %28, %54 : vector<16x16xf32>
      %56 = arith.addf %16, %55 : vector<16x16xf32>
      %57 = vector.extract_strided_slice %32 {offsets = [0, 8], sizes = [16, 16], strides = [1, 1]} : vector<16x32xf32> to vector<16x16xf32>
      %58 = arith.mulf %28, %57 : vector<16x16xf32>
      %59 = arith.addf %17, %58 : vector<16x16xf32>
      %60 = vector.extract_strided_slice %32 {offsets = [0, 9], sizes = [16, 16], strides = [1, 1]} : vector<16x32xf32> to vector<16x16xf32>
      %61 = arith.mulf %28, %60 : vector<16x16xf32>
      %62 = arith.addf %18, %61 : vector<16x16xf32>
      %63 = vector.extract_strided_slice %32 {offsets = [0, 10], sizes = [16, 16], strides = [1, 1]} : vector<16x32xf32> to vector<16x16xf32>
      %64 = arith.mulf %28, %63 : vector<16x16xf32>
      %65 = arith.addf %19, %64 : vector<16x16xf32>
      %66 = vector.extract_strided_slice %32 {offsets = [0, 11], sizes = [16, 16], strides = [1, 1]} : vector<16x32xf32> to vector<16x16xf32>
      %67 = arith.mulf %28, %66 : vector<16x16xf32>
      %68 = arith.addf %20, %67 : vector<16x16xf32>
      %69 = vector.extract_strided_slice %32 {offsets = [0, 12], sizes = [16, 16], strides = [1, 1]} : vector<16x32xf32> to vector<16x16xf32>
      %70 = arith.mulf %28, %69 : vector<16x16xf32>
      %71 = arith.addf %21, %70 : vector<16x16xf32>
      %72 = vector.extract_strided_slice %32 {offsets = [0, 13], sizes = [16, 16], strides = [1, 1]} : vector<16x32xf32> to vector<16x16xf32>
      %73 = arith.mulf %28, %72 : vector<16x16xf32>
      %74 = arith.addf %22, %73 : vector<16x16xf32>
      %75 = vector.extract_strided_slice %32 {offsets = [0, 14], sizes = [16, 16], strides = [1, 1]} : vector<16x32xf32> to vector<16x16xf32>
      %76 = arith.mulf %28, %75 : vector<16x16xf32>
      %77 = arith.addf %23, %76 : vector<16x16xf32>
      %78 = vector.extract_strided_slice %32 {offsets = [0, 15], sizes = [16, 16], strides = [1, 1]} : vector<16x32xf32> to vector<16x16xf32>
      %79 = arith.mulf %28, %78 : vector<16x16xf32>
      %80 = arith.addf %24, %79 : vector<16x16xf32>
      %81 = vector.extract_strided_slice %32 {offsets = [0, 16], sizes = [16, 16], strides = [1, 1]} : vector<16x32xf32> to vector<16x16xf32>
      %82 = arith.mulf %28, %81 : vector<16x16xf32>
      %83 = arith.addf %25, %82 : vector<16x16xf32>
      %c1_i32_29 = arith.constant 1 : i32
      %c0_30 = arith.constant 0 : index
      %84 = arith.index_cast %c1_i32_29 : i32 to index
      %c0_31 = arith.constant 0 : index
      %c0_32 = arith.constant 0 : index
      %85 = vector.load %arg3[%c0_30, %84, %c0_31, %c0_32] : memref<1x4x16x16xf32, #tpu.memory_space<vmem>>, vector<1x1x16x16xf32>
      %86 = vector.shape_cast %85 : vector<1x1x16x16xf32> to vector<16x16xf32>
      %c0_33 = arith.constant 0 : index
      %c0_34 = arith.constant 0 : index
      %87 = arith.index_cast %c1_i32_29 : i32 to index
      %88 = arith.index_cast %5 : i32 to index
      %c0_35 = arith.constant 0 : index
      %89 = vector.load %arg4[%c0_33, %c0_34, %87, %88, %c0_35] : memref<1x1x4x32x32xf32, #tpu.memory_space<vmem>>, vector<1x1x1x16x32xf32>
      %90 = vector.shape_cast %89 : vector<1x1x1x16x32xf32> to vector<16x32xf32>
      %91 = vector.extract_strided_slice %90 {offsets = [0, 0], sizes = [16, 16], strides = [1, 1]} : vector<16x32xf32> to vector<16x16xf32>
      %92 = arith.mulf %86, %91 : vector<16x16xf32>
      %93 = arith.addf %35, %92 : vector<16x16xf32>
      %94 = vector.extract_strided_slice %90 {offsets = [0, 1], sizes = [16, 16], strides = [1, 1]} : vector<16x32xf32> to vector<16x16xf32>
      %95 = arith.mulf %86, %94 : vector<16x16xf32>
      %96 = arith.addf %38, %95 : vector<16x16xf32>
      %97 = vector.extract_strided_slice %90 {offsets = [0, 2], sizes = [16, 16], strides = [1, 1]} : vector<16x32xf32> to vector<16x16xf32>
      %98 = arith.mulf %86, %97 : vector<16x16xf32>
      %99 = arith.addf %41, %98 : vector<16x16xf32>
      %100 = vector.extract_strided_slice %90 {offsets = [0, 3], sizes = [16, 16], strides = [1, 1]} : vector<16x32xf32> to vector<16x16xf32>
      %101 = arith.mulf %86, %100 : vector<16x16xf32>
      %102 = arith.addf %44, %101 : vector<16x16xf32>
      %103 = vector.extract_strided_slice %90 {offsets = [0, 4], sizes = [16, 16], strides = [1, 1]} : vector<16x32xf32> to vector<16x16xf32>
      %104 = arith.mulf %86, %103 : vector<16x16xf32>
      %105 = arith.addf %47, %104 : vector<16x16xf32>
      %106 = vector.extract_strided_slice %90 {offsets = [0, 5], sizes = [16, 16], strides = [1, 1]} : vector<16x32xf32> to vector<16x16xf32>
      %107 = arith.mulf %86, %106 : vector<16x16xf32>
      %108 = arith.addf %50, %107 : vector<16x16xf32>
      %109 = vector.extract_strided_slice %90 {offsets = [0, 6], sizes = [16, 16], strides = [1, 1]} : vector<16x32xf32> to vector<16x16xf32>
      %110 = arith.mulf %86, %109 : vector<16x16xf32>
      %111 = arith.addf %53, %110 : vector<16x16xf32>
      %112 = vector.extract_strided_slice %90 {offsets = [0, 7], sizes = [16, 16], strides = [1, 1]} : vector<16x32xf32> to vector<16x16xf32>
      %113 = arith.mulf %86, %112 : vector<16x16xf32>
      %114 = arith.addf %56, %113 : vector<16x16xf32>
      %115 = vector.extract_strided_slice %90 {offsets = [0, 8], sizes = [16, 16], strides = [1, 1]} : vector<16x32xf32> to vector<16x16xf32>
      %116 = arith.mulf %86, %115 : vector<16x16xf32>
      %117 = arith.addf %59, %116 : vector<16x16xf32>
      %118 = vector.extract_strided_slice %90 {offsets = [0, 9], sizes = [16, 16], strides = [1, 1]} : vector<16x32xf32> to vector<16x16xf32>
      %119 = arith.mulf %86, %118 : vector<16x16xf32>
      %120 = arith.addf %62, %119 : vector<16x16xf32>
      %121 = vector.extract_strided_slice %90 {offsets = [0, 10], sizes = [16, 16], strides = [1, 1]} : vector<16x32xf32> to vector<16x16xf32>
      %122 = arith.mulf %86, %121 : vector<16x16xf32>
      %123 = arith.addf %65, %122 : vector<16x16xf32>
      %124 = vector.extract_strided_slice %90 {offsets = [0, 11], sizes = [16, 16], strides = [1, 1]} : vector<16x32xf32> to vector<16x16xf32>
      %125 = arith.mulf %86, %124 : vector<16x16xf32>
      %126 = arith.addf %68, %125 : vector<16x16xf32>
      %127 = vector.extract_strided_slice %90 {offsets = [0, 12], sizes = [16, 16], strides = [1, 1]} : vector<16x32xf32> to vector<16x16xf32>
      %128 = arith.mulf %86, %127 : vector<16x16xf32>
      %129 = arith.addf %71, %128 : vector<16x16xf32>
      %130 = vector.extract_strided_slice %90 {offsets = [0, 13], sizes = [16, 16], strides = [1, 1]} : vector<16x32xf32> to vector<16x16xf32>
      %131 = arith.mulf %86, %130 : vector<16x16xf32>
      %132 = arith.addf %74, %131 : vector<16x16xf32>
      %133 = vector.extract_strided_slice %90 {offsets = [0, 14], sizes = [16, 16], strides = [1, 1]} : vector<16x32xf32> to vector<16x16xf32>
      %134 = arith.mulf %86, %133 : vector<16x16xf32>
      %135 = arith.addf %77, %134 : vector<16x16xf32>
      %136 = vector.extract_strided_slice %90 {offsets = [0, 15], sizes = [16, 16], strides = [1, 1]} : vector<16x32xf32> to vector<16x16xf32>
      %137 = arith.mulf %86, %136 : vector<16x16xf32>
      %138 = arith.addf %80, %137 : vector<16x16xf32>
      %139 = vector.extract_strided_slice %90 {offsets = [0, 16], sizes = [16, 16], strides = [1, 1]} : vector<16x32xf32> to vector<16x16xf32>
      %140 = arith.mulf %86, %139 : vector<16x16xf32>
      %141 = arith.addf %83, %140 : vector<16x16xf32>
      %c2_i32 = arith.constant 2 : i32
      %c0_36 = arith.constant 0 : index
      %142 = arith.index_cast %c2_i32 : i32 to index
      %c0_37 = arith.constant 0 : index
      %c0_38 = arith.constant 0 : index
      %143 = vector.load %arg3[%c0_36, %142, %c0_37, %c0_38] : memref<1x4x16x16xf32, #tpu.memory_space<vmem>>, vector<1x1x16x16xf32>
      %144 = vector.shape_cast %143 : vector<1x1x16x16xf32> to vector<16x16xf32>
      %c0_39 = arith.constant 0 : index
      %c0_40 = arith.constant 0 : index
      %145 = arith.index_cast %c2_i32 : i32 to index
      %146 = arith.index_cast %5 : i32 to index
      %c0_41 = arith.constant 0 : index
      %147 = vector.load %arg4[%c0_39, %c0_40, %145, %146, %c0_41] : memref<1x1x4x32x32xf32, #tpu.memory_space<vmem>>, vector<1x1x1x16x32xf32>
      %148 = vector.shape_cast %147 : vector<1x1x1x16x32xf32> to vector<16x32xf32>
      %149 = vector.extract_strided_slice %148 {offsets = [0, 0], sizes = [16, 16], strides = [1, 1]} : vector<16x32xf32> to vector<16x16xf32>
      %150 = arith.mulf %144, %149 : vector<16x16xf32>
      %151 = arith.addf %93, %150 : vector<16x16xf32>
      %152 = vector.extract_strided_slice %148 {offsets = [0, 1], sizes = [16, 16], strides = [1, 1]} : vector<16x32xf32> to vector<16x16xf32>
      %153 = arith.mulf %144, %152 : vector<16x16xf32>
      %154 = arith.addf %96, %153 : vector<16x16xf32>
      %155 = vector.extract_strided_slice %148 {offsets = [0, 2], sizes = [16, 16], strides = [1, 1]} : vector<16x32xf32> to vector<16x16xf32>
      %156 = arith.mulf %144, %155 : vector<16x16xf32>
      %157 = arith.addf %99, %156 : vector<16x16xf32>
      %158 = vector.extract_strided_slice %148 {offsets = [0, 3], sizes = [16, 16], strides = [1, 1]} : vector<16x32xf32> to vector<16x16xf32>
      %159 = arith.mulf %144, %158 : vector<16x16xf32>
      %160 = arith.addf %102, %159 : vector<16x16xf32>
      %161 = vector.extract_strided_slice %148 {offsets = [0, 4], sizes = [16, 16], strides = [1, 1]} : vector<16x32xf32> to vector<16x16xf32>
      %162 = arith.mulf %144, %161 : vector<16x16xf32>
      %163 = arith.addf %105, %162 : vector<16x16xf32>
      %164 = vector.extract_strided_slice %148 {offsets = [0, 5], sizes = [16, 16], strides = [1, 1]} : vector<16x32xf32> to vector<16x16xf32>
      %165 = arith.mulf %144, %164 : vector<16x16xf32>
      %166 = arith.addf %108, %165 : vector<16x16xf32>
      %167 = vector.extract_strided_slice %148 {offsets = [0, 6], sizes = [16, 16], strides = [1, 1]} : vector<16x32xf32> to vector<16x16xf32>
      %168 = arith.mulf %144, %167 : vector<16x16xf32>
      %169 = arith.addf %111, %168 : vector<16x16xf32>
      %170 = vector.extract_strided_slice %148 {offsets = [0, 7], sizes = [16, 16], strides = [1, 1]} : vector<16x32xf32> to vector<16x16xf32>
      %171 = arith.mulf %144, %170 : vector<16x16xf32>
      %172 = arith.addf %114, %171 : vector<16x16xf32>
      %173 = vector.extract_strided_slice %148 {offsets = [0, 8], sizes = [16, 16], strides = [1, 1]} : vector<16x32xf32> to vector<16x16xf32>
      %174 = arith.mulf %144, %173 : vector<16x16xf32>
      %175 = arith.addf %117, %174 : vector<16x16xf32>
      %176 = vector.extract_strided_slice %148 {offsets = [0, 9], sizes = [16, 16], strides = [1, 1]} : vector<16x32xf32> to vector<16x16xf32>
      %177 = arith.mulf %144, %176 : vector<16x16xf32>
      %178 = arith.addf %120, %177 : vector<16x16xf32>
      %179 = vector.extract_strided_slice %148 {offsets = [0, 10], sizes = [16, 16], strides = [1, 1]} : vector<16x32xf32> to vector<16x16xf32>
      %180 = arith.mulf %144, %179 : vector<16x16xf32>
      %181 = arith.addf %123, %180 : vector<16x16xf32>
      %182 = vector.extract_strided_slice %148 {offsets = [0, 11], sizes = [16, 16], strides = [1, 1]} : vector<16x32xf32> to vector<16x16xf32>
      %183 = arith.mulf %144, %182 : vector<16x16xf32>
      %184 = arith.addf %126, %183 : vector<16x16xf32>
      %185 = vector.extract_strided_slice %148 {offsets = [0, 12], sizes = [16, 16], strides = [1, 1]} : vector<16x32xf32> to vector<16x16xf32>
      %186 = arith.mulf %144, %185 : vector<16x16xf32>
      %187 = arith.addf %129, %186 : vector<16x16xf32>
      %188 = vector.extract_strided_slice %148 {offsets = [0, 13], sizes = [16, 16], strides = [1, 1]} : vector<16x32xf32> to vector<16x16xf32>
      %189 = arith.mulf %144, %188 : vector<16x16xf32>
      %190 = arith.addf %132, %189 : vector<16x16xf32>
      %191 = vector.extract_strided_slice %148 {offsets = [0, 14], sizes = [16, 16], strides = [1, 1]} : vector<16x32xf32> to vector<16x16xf32>
      %192 = arith.mulf %144, %191 : vector<16x16xf32>
      %193 = arith.addf %135, %192 : vector<16x16xf32>
      %194 = vector.extract_strided_slice %148 {offsets = [0, 15], sizes = [16, 16], strides = [1, 1]} : vector<16x32xf32> to vector<16x16xf32>
      %195 = arith.mulf %144, %194 : vector<16x16xf32>
      %196 = arith.addf %138, %195 : vector<16x16xf32>
      %197 = vector.extract_strided_slice %148 {offsets = [0, 16], sizes = [16, 16], strides = [1, 1]} : vector<16x32xf32> to vector<16x16xf32>
      %198 = arith.mulf %144, %197 : vector<16x16xf32>
      %199 = arith.addf %141, %198 : vector<16x16xf32>
      %c3_i32 = arith.constant 3 : i32
      %c0_42 = arith.constant 0 : index
      %200 = arith.index_cast %c3_i32 : i32 to index
      %c0_43 = arith.constant 0 : index
      %c0_44 = arith.constant 0 : index
      %201 = vector.load %arg3[%c0_42, %200, %c0_43, %c0_44] : memref<1x4x16x16xf32, #tpu.memory_space<vmem>>, vector<1x1x16x16xf32>
      %202 = vector.shape_cast %201 : vector<1x1x16x16xf32> to vector<16x16xf32>
      %c0_45 = arith.constant 0 : index
      %c0_46 = arith.constant 0 : index
      %203 = arith.index_cast %c3_i32 : i32 to index
      %204 = arith.index_cast %5 : i32 to index
      %c0_47 = arith.constant 0 : index
      %205 = vector.load %arg4[%c0_45, %c0_46, %203, %204, %c0_47] : memref<1x1x4x32x32xf32, #tpu.memory_space<vmem>>, vector<1x1x1x16x32xf32>
      %206 = vector.shape_cast %205 : vector<1x1x1x16x32xf32> to vector<16x32xf32>
      %207 = vector.extract_strided_slice %206 {offsets = [0, 0], sizes = [16, 16], strides = [1, 1]} : vector<16x32xf32> to vector<16x16xf32>
      %208 = arith.mulf %202, %207 : vector<16x16xf32>
      %209 = arith.addf %151, %208 : vector<16x16xf32>
      %210 = vector.extract_strided_slice %206 {offsets = [0, 1], sizes = [16, 16], strides = [1, 1]} : vector<16x32xf32> to vector<16x16xf32>
      %211 = arith.mulf %202, %210 : vector<16x16xf32>
      %212 = arith.addf %154, %211 : vector<16x16xf32>
      %213 = vector.extract_strided_slice %206 {offsets = [0, 2], sizes = [16, 16], strides = [1, 1]} : vector<16x32xf32> to vector<16x16xf32>
      %214 = arith.mulf %202, %213 : vector<16x16xf32>
      %215 = arith.addf %157, %214 : vector<16x16xf32>
      %216 = vector.extract_strided_slice %206 {offsets = [0, 3], sizes = [16, 16], strides = [1, 1]} : vector<16x32xf32> to vector<16x16xf32>
      %217 = arith.mulf %202, %216 : vector<16x16xf32>
      %218 = arith.addf %160, %217 : vector<16x16xf32>
      %219 = vector.extract_strided_slice %206 {offsets = [0, 4], sizes = [16, 16], strides = [1, 1]} : vector<16x32xf32> to vector<16x16xf32>
      %220 = arith.mulf %202, %219 : vector<16x16xf32>
      %221 = arith.addf %163, %220 : vector<16x16xf32>
      %222 = vector.extract_strided_slice %206 {offsets = [0, 5], sizes = [16, 16], strides = [1, 1]} : vector<16x32xf32> to vector<16x16xf32>
      %223 = arith.mulf %202, %222 : vector<16x16xf32>
      %224 = arith.addf %166, %223 : vector<16x16xf32>
      %225 = vector.extract_strided_slice %206 {offsets = [0, 6], sizes = [16, 16], strides = [1, 1]} : vector<16x32xf32> to vector<16x16xf32>
      %226 = arith.mulf %202, %225 : vector<16x16xf32>
      %227 = arith.addf %169, %226 : vector<16x16xf32>
      %228 = vector.extract_strided_slice %206 {offsets = [0, 7], sizes = [16, 16], strides = [1, 1]} : vector<16x32xf32> to vector<16x16xf32>
      %229 = arith.mulf %202, %228 : vector<16x16xf32>
      %230 = arith.addf %172, %229 : vector<16x16xf32>
      %231 = vector.extract_strided_slice %206 {offsets = [0, 8], sizes = [16, 16], strides = [1, 1]} : vector<16x32xf32> to vector<16x16xf32>
      %232 = arith.mulf %202, %231 : vector<16x16xf32>
      %233 = arith.addf %175, %232 : vector<16x16xf32>
      %234 = vector.extract_strided_slice %206 {offsets = [0, 9], sizes = [16, 16], strides = [1, 1]} : vector<16x32xf32> to vector<16x16xf32>
      %235 = arith.mulf %202, %234 : vector<16x16xf32>
      %236 = arith.addf %178, %235 : vector<16x16xf32>
      %237 = vector.extract_strided_slice %206 {offsets = [0, 10], sizes = [16, 16], strides = [1, 1]} : vector<16x32xf32> to vector<16x16xf32>
      %238 = arith.mulf %202, %237 : vector<16x16xf32>
      %239 = arith.addf %181, %238 : vector<16x16xf32>
      %240 = vector.extract_strided_slice %206 {offsets = [0, 11], sizes = [16, 16], strides = [1, 1]} : vector<16x32xf32> to vector<16x16xf32>
      %241 = arith.mulf %202, %240 : vector<16x16xf32>
      %242 = arith.addf %184, %241 : vector<16x16xf32>
      %243 = vector.extract_strided_slice %206 {offsets = [0, 12], sizes = [16, 16], strides = [1, 1]} : vector<16x32xf32> to vector<16x16xf32>
      %244 = arith.mulf %202, %243 : vector<16x16xf32>
      %245 = arith.addf %187, %244 : vector<16x16xf32>
      %246 = vector.extract_strided_slice %206 {offsets = [0, 13], sizes = [16, 16], strides = [1, 1]} : vector<16x32xf32> to vector<16x16xf32>
      %247 = arith.mulf %202, %246 : vector<16x16xf32>
      %248 = arith.addf %190, %247 : vector<16x16xf32>
      %249 = vector.extract_strided_slice %206 {offsets = [0, 14], sizes = [16, 16], strides = [1, 1]} : vector<16x32xf32> to vector<16x16xf32>
      %250 = arith.mulf %202, %249 : vector<16x16xf32>
      %251 = arith.addf %193, %250 : vector<16x16xf32>
      %252 = vector.extract_strided_slice %206 {offsets = [0, 15], sizes = [16, 16], strides = [1, 1]} : vector<16x32xf32> to vector<16x16xf32>
      %253 = arith.mulf %202, %252 : vector<16x16xf32>
      %254 = arith.addf %196, %253 : vector<16x16xf32>
      %255 = vector.extract_strided_slice %206 {offsets = [0, 16], sizes = [16, 16], strides = [1, 1]} : vector<16x32xf32> to vector<16x16xf32>
      %256 = arith.mulf %202, %255 : vector<16x16xf32>
      %257 = arith.addf %199, %256 : vector<16x16xf32>
      %c4_i32 = arith.constant 4 : i32
      %258 = vector.extract_strided_slice %8 {offsets = [0, 0], sizes = [16, 16], strides = [1, 1]} : vector<16x32xf32> to vector<16x16xf32>
      %259 = arith.mulf %209, %258 : vector<16x16xf32>
      %c17_i32_48 = arith.constant 17 : i32
      %260 = arith.muli %3, %c17_i32_48 : i32
      %c0_i32_49 = arith.constant 0 : i32
      %261 = arith.addi %260, %c0_i32_49 : i32
      %c0_50 = arith.constant 0 : index
      %262 = arith.index_cast %261 : i32 to index
      %c0_51 = arith.constant 0 : index
      %c0_52 = arith.constant 0 : index
      %263 = vector.load %arg6[%c0_50, %262, %c0_51, %c0_52] : memref<1x289x16x16xf32, #tpu.memory_space<vmem>>, vector<1x1x16x16xf32>
      %264 = vector.shape_cast %263 : vector<1x1x16x16xf32> to vector<16x16xf32>
      %265 = vector.shape_cast %259 : vector<16x16xf32> to vector<1x1x16x16xf32>
      tpu.vector_store %arg6[%c0_50, %262, %c0_51, %c0_52], %265 {strides = array<i32>} : memref<1x289x16x16xf32, #tpu.memory_space<vmem>>, vector<1x1x16x16xf32>,
      %266 = arith.subf %209, %259 : vector<16x16xf32>
      %c0_53 = arith.constant 0 : index
      %267 = arith.index_cast %261 : i32 to index
      %c0_54 = arith.constant 0 : index
      %c0_55 = arith.constant 0 : index
      %268 = vector.load %arg7[%c0_53, %267, %c0_54, %c0_55] : memref<1x289x16x16xf32, #tpu.memory_space<vmem>>, vector<1x1x16x16xf32>
      %269 = vector.shape_cast %268 : vector<1x1x16x16xf32> to vector<16x16xf32>
      %270 = vector.shape_cast %266 : vector<16x16xf32> to vector<1x1x16x16xf32>
      tpu.vector_store %arg7[%c0_53, %267, %c0_54, %c0_55], %270 {strides = array<i32>} : memref<1x289x16x16xf32, #tpu.memory_space<vmem>>, vector<1x1x16x16xf32>,
      %271 = vector.extract_strided_slice %8 {offsets = [0, 1], sizes = [16, 16], strides = [1, 1]} : vector<16x32xf32> to vector<16x16xf32>
      %272 = arith.mulf %212, %271 : vector<16x16xf32>
      %c17_i32_56 = arith.constant 17 : i32
      %273 = arith.muli %3, %c17_i32_56 : i32
      %c1_i32_57 = arith.constant 1 : i32
      %274 = arith.addi %273, %c1_i32_57 : i32
      %c0_58 = arith.constant 0 : index
      %275 = arith.index_cast %274 : i32 to index
      %c0_59 = arith.constant 0 : index
      %c0_60 = arith.constant 0 : index
      %276 = vector.load %arg6[%c0_58, %275, %c0_59, %c0_60] : memref<1x289x16x16xf32, #tpu.memory_space<vmem>>, vector<1x1x16x16xf32>
      %277 = vector.shape_cast %276 : vector<1x1x16x16xf32> to vector<16x16xf32>
      %278 = vector.shape_cast %272 : vector<16x16xf32> to vector<1x1x16x16xf32>
      tpu.vector_store %arg6[%c0_58, %275, %c0_59, %c0_60], %278 {strides = array<i32>} : memref<1x289x16x16xf32, #tpu.memory_space<vmem>>, vector<1x1x16x16xf32>,
      %279 = arith.subf %212, %272 : vector<16x16xf32>
      %c0_61 = arith.constant 0 : index
      %280 = arith.index_cast %274 : i32 to index
      %c0_62 = arith.constant 0 : index
      %c0_63 = arith.constant 0 : index
      %281 = vector.load %arg7[%c0_61, %280, %c0_62, %c0_63] : memref<1x289x16x16xf32, #tpu.memory_space<vmem>>, vector<1x1x16x16xf32>
      %282 = vector.shape_cast %281 : vector<1x1x16x16xf32> to vector<16x16xf32>
      %283 = vector.shape_cast %279 : vector<16x16xf32> to vector<1x1x16x16xf32>
      tpu.vector_store %arg7[%c0_61, %280, %c0_62, %c0_63], %283 {strides = array<i32>} : memref<1x289x16x16xf32, #tpu.memory_space<vmem>>, vector<1x1x16x16xf32>,
      %284 = vector.extract_strided_slice %8 {offsets = [0, 2], sizes = [16, 16], strides = [1, 1]} : vector<16x32xf32> to vector<16x16xf32>
      %285 = arith.mulf %215, %284 : vector<16x16xf32>
      %c17_i32_64 = arith.constant 17 : i32
      %286 = arith.muli %3, %c17_i32_64 : i32
      %c2_i32_65 = arith.constant 2 : i32
      %287 = arith.addi %286, %c2_i32_65 : i32
      %c0_66 = arith.constant 0 : index
      %288 = arith.index_cast %287 : i32 to index
      %c0_67 = arith.constant 0 : index
      %c0_68 = arith.constant 0 : index
      %289 = vector.load %arg6[%c0_66, %288, %c0_67, %c0_68] : memref<1x289x16x16xf32, #tpu.memory_space<vmem>>, vector<1x1x16x16xf32>
      %290 = vector.shape_cast %289 : vector<1x1x16x16xf32> to vector<16x16xf32>
      %291 = vector.shape_cast %285 : vector<16x16xf32> to vector<1x1x16x16xf32>
      tpu.vector_store %arg6[%c0_66, %288, %c0_67, %c0_68], %291 {strides = array<i32>} : memref<1x289x16x16xf32, #tpu.memory_space<vmem>>, vector<1x1x16x16xf32>,
      %292 = arith.subf %215, %285 : vector<16x16xf32>
      %c0_69 = arith.constant 0 : index
      %293 = arith.index_cast %287 : i32 to index
      %c0_70 = arith.constant 0 : index
      %c0_71 = arith.constant 0 : index
      %294 = vector.load %arg7[%c0_69, %293, %c0_70, %c0_71] : memref<1x289x16x16xf32, #tpu.memory_space<vmem>>, vector<1x1x16x16xf32>
      %295 = vector.shape_cast %294 : vector<1x1x16x16xf32> to vector<16x16xf32>
      %296 = vector.shape_cast %292 : vector<16x16xf32> to vector<1x1x16x16xf32>
      tpu.vector_store %arg7[%c0_69, %293, %c0_70, %c0_71], %296 {strides = array<i32>} : memref<1x289x16x16xf32, #tpu.memory_space<vmem>>, vector<1x1x16x16xf32>,
      %297 = vector.extract_strided_slice %8 {offsets = [0, 3], sizes = [16, 16], strides = [1, 1]} : vector<16x32xf32> to vector<16x16xf32>
      %298 = arith.mulf %218, %297 : vector<16x16xf32>
      %c17_i32_72 = arith.constant 17 : i32
      %299 = arith.muli %3, %c17_i32_72 : i32
      %c3_i32_73 = arith.constant 3 : i32
      %300 = arith.addi %299, %c3_i32_73 : i32
      %c0_74 = arith.constant 0 : index
      %301 = arith.index_cast %300 : i32 to index
      %c0_75 = arith.constant 0 : index
      %c0_76 = arith.constant 0 : index
      %302 = vector.load %arg6[%c0_74, %301, %c0_75, %c0_76] : memref<1x289x16x16xf32, #tpu.memory_space<vmem>>, vector<1x1x16x16xf32>
      %303 = vector.shape_cast %302 : vector<1x1x16x16xf32> to vector<16x16xf32>
      %304 = vector.shape_cast %298 : vector<16x16xf32> to vector<1x1x16x16xf32>
      tpu.vector_store %arg6[%c0_74, %301, %c0_75, %c0_76], %304 {strides = array<i32>} : memref<1x289x16x16xf32, #tpu.memory_space<vmem>>, vector<1x1x16x16xf32>,
      %305 = arith.subf %218, %298 : vector<16x16xf32>
      %c0_77 = arith.constant 0 : index
      %306 = arith.index_cast %300 : i32 to index
      %c0_78 = arith.constant 0 : index
      %c0_79 = arith.constant 0 : index
      %307 = vector.load %arg7[%c0_77, %306, %c0_78, %c0_79] : memref<1x289x16x16xf32, #tpu.memory_space<vmem>>, vector<1x1x16x16xf32>
      %308 = vector.shape_cast %307 : vector<1x1x16x16xf32> to vector<16x16xf32>
      %309 = vector.shape_cast %305 : vector<16x16xf32> to vector<1x1x16x16xf32>
      tpu.vector_store %arg7[%c0_77, %306, %c0_78, %c0_79], %309 {strides = array<i32>} : memref<1x289x16x16xf32, #tpu.memory_space<vmem>>, vector<1x1x16x16xf32>,
      %310 = vector.extract_strided_slice %8 {offsets = [0, 4], sizes = [16, 16], strides = [1, 1]} : vector<16x32xf32> to vector<16x16xf32>
      %311 = arith.mulf %221, %310 : vector<16x16xf32>
      %c17_i32_80 = arith.constant 17 : i32
      %312 = arith.muli %3, %c17_i32_80 : i32
      %c4_i32_81 = arith.constant 4 : i32
      %313 = arith.addi %312, %c4_i32_81 : i32
      %c0_82 = arith.constant 0 : index
      %314 = arith.index_cast %313 : i32 to index
      %c0_83 = arith.constant 0 : index
      %c0_84 = arith.constant 0 : index
      %315 = vector.load %arg6[%c0_82, %314, %c0_83, %c0_84] : memref<1x289x16x16xf32, #tpu.memory_space<vmem>>, vector<1x1x16x16xf32>
      %316 = vector.shape_cast %315 : vector<1x1x16x16xf32> to vector<16x16xf32>
      %317 = vector.shape_cast %311 : vector<16x16xf32> to vector<1x1x16x16xf32>
      tpu.vector_store %arg6[%c0_82, %314, %c0_83, %c0_84], %317 {strides = array<i32>} : memref<1x289x16x16xf32, #tpu.memory_space<vmem>>, vector<1x1x16x16xf32>,
      %318 = arith.subf %221, %311 : vector<16x16xf32>
      %c0_85 = arith.constant 0 : index
      %319 = arith.index_cast %313 : i32 to index
      %c0_86 = arith.constant 0 : index
      %c0_87 = arith.constant 0 : index
      %320 = vector.load %arg7[%c0_85, %319, %c0_86, %c0_87] : memref<1x289x16x16xf32, #tpu.memory_space<vmem>>, vector<1x1x16x16xf32>
      %321 = vector.shape_cast %320 : vector<1x1x16x16xf32> to vector<16x16xf32>
      %322 = vector.shape_cast %318 : vector<16x16xf32> to vector<1x1x16x16xf32>
      tpu.vector_store %arg7[%c0_85, %319, %c0_86, %c0_87], %322 {strides = array<i32>} : memref<1x289x16x16xf32, #tpu.memory_space<vmem>>, vector<1x1x16x16xf32>,
      %323 = vector.extract_strided_slice %8 {offsets = [0, 5], sizes = [16, 16], strides = [1, 1]} : vector<16x32xf32> to vector<16x16xf32>
      %324 = arith.mulf %224, %323 : vector<16x16xf32>
      %c17_i32_88 = arith.constant 17 : i32
      %325 = arith.muli %3, %c17_i32_88 : i32
      %c5_i32 = arith.constant 5 : i32
      %326 = arith.addi %325, %c5_i32 : i32
      %c0_89 = arith.constant 0 : index
      %327 = arith.index_cast %326 : i32 to index
      %c0_90 = arith.constant 0 : index
      %c0_91 = arith.constant 0 : index
      %328 = vector.load %arg6[%c0_89, %327, %c0_90, %c0_91] : memref<1x289x16x16xf32, #tpu.memory_space<vmem>>, vector<1x1x16x16xf32>
      %329 = vector.shape_cast %328 : vector<1x1x16x16xf32> to vector<16x16xf32>
      %330 = vector.shape_cast %324 : vector<16x16xf32> to vector<1x1x16x16xf32>
      tpu.vector_store %arg6[%c0_89, %327, %c0_90, %c0_91], %330 {strides = array<i32>} : memref<1x289x16x16xf32, #tpu.memory_space<vmem>>, vector<1x1x16x16xf32>,
      %331 = arith.subf %224, %324 : vector<16x16xf32>
      %c0_92 = arith.constant 0 : index
      %332 = arith.index_cast %326 : i32 to index
      %c0_93 = arith.constant 0 : index
      %c0_94 = arith.constant 0 : index
      %333 = vector.load %arg7[%c0_92, %332, %c0_93, %c0_94] : memref<1x289x16x16xf32, #tpu.memory_space<vmem>>, vector<1x1x16x16xf32>
      %334 = vector.shape_cast %333 : vector<1x1x16x16xf32> to vector<16x16xf32>
      %335 = vector.shape_cast %331 : vector<16x16xf32> to vector<1x1x16x16xf32>
      tpu.vector_store %arg7[%c0_92, %332, %c0_93, %c0_94], %335 {strides = array<i32>} : memref<1x289x16x16xf32, #tpu.memory_space<vmem>>, vector<1x1x16x16xf32>,
      %336 = vector.extract_strided_slice %8 {offsets = [0, 6], sizes = [16, 16], strides = [1, 1]} : vector<16x32xf32> to vector<16x16xf32>
      %337 = arith.mulf %227, %336 : vector<16x16xf32>
      %c17_i32_95 = arith.constant 17 : i32
      %338 = arith.muli %3, %c17_i32_95 : i32
      %c6_i32 = arith.constant 6 : i32
      %339 = arith.addi %338, %c6_i32 : i32
      %c0_96 = arith.constant 0 : index
      %340 = arith.index_cast %339 : i32 to index
      %c0_97 = arith.constant 0 : index
      %c0_98 = arith.constant 0 : index
      %341 = vector.load %arg6[%c0_96, %340, %c0_97, %c0_98] : memref<1x289x16x16xf32, #tpu.memory_space<vmem>>, vector<1x1x16x16xf32>
      %342 = vector.shape_cast %341 : vector<1x1x16x16xf32> to vector<16x16xf32>
      %343 = vector.shape_cast %337 : vector<16x16xf32> to vector<1x1x16x16xf32>
      tpu.vector_store %arg6[%c0_96, %340, %c0_97, %c0_98], %343 {strides = array<i32>} : memref<1x289x16x16xf32, #tpu.memory_space<vmem>>, vector<1x1x16x16xf32>,
      %344 = arith.subf %227, %337 : vector<16x16xf32>
      %c0_99 = arith.constant 0 : index
      %345 = arith.index_cast %339 : i32 to index
      %c0_100 = arith.constant 0 : index
      %c0_101 = arith.constant 0 : index
      %346 = vector.load %arg7[%c0_99, %345, %c0_100, %c0_101] : memref<1x289x16x16xf32, #tpu.memory_space<vmem>>, vector<1x1x16x16xf32>
      %347 = vector.shape_cast %346 : vector<1x1x16x16xf32> to vector<16x16xf32>
      %348 = vector.shape_cast %344 : vector<16x16xf32> to vector<1x1x16x16xf32>
      tpu.vector_store %arg7[%c0_99, %345, %c0_100, %c0_101], %348 {strides = array<i32>} : memref<1x289x16x16xf32, #tpu.memory_space<vmem>>, vector<1x1x16x16xf32>,
      %349 = vector.extract_strided_slice %8 {offsets = [0, 7], sizes = [16, 16], strides = [1, 1]} : vector<16x32xf32> to vector<16x16xf32>
      %350 = arith.mulf %230, %349 : vector<16x16xf32>
      %c17_i32_102 = arith.constant 17 : i32
      %351 = arith.muli %3, %c17_i32_102 : i32
      %c7_i32 = arith.constant 7 : i32
      %352 = arith.addi %351, %c7_i32 : i32
      %c0_103 = arith.constant 0 : index
      %353 = arith.index_cast %352 : i32 to index
      %c0_104 = arith.constant 0 : index
      %c0_105 = arith.constant 0 : index
      %354 = vector.load %arg6[%c0_103, %353, %c0_104, %c0_105] : memref<1x289x16x16xf32, #tpu.memory_space<vmem>>, vector<1x1x16x16xf32>
      %355 = vector.shape_cast %354 : vector<1x1x16x16xf32> to vector<16x16xf32>
      %356 = vector.shape_cast %350 : vector<16x16xf32> to vector<1x1x16x16xf32>
      tpu.vector_store %arg6[%c0_103, %353, %c0_104, %c0_105], %356 {strides = array<i32>} : memref<1x289x16x16xf32, #tpu.memory_space<vmem>>, vector<1x1x16x16xf32>,
      %357 = arith.subf %230, %350 : vector<16x16xf32>
      %c0_106 = arith.constant 0 : index
      %358 = arith.index_cast %352 : i32 to index
      %c0_107 = arith.constant 0 : index
      %c0_108 = arith.constant 0 : index
      %359 = vector.load %arg7[%c0_106, %358, %c0_107, %c0_108] : memref<1x289x16x16xf32, #tpu.memory_space<vmem>>, vector<1x1x16x16xf32>
      %360 = vector.shape_cast %359 : vector<1x1x16x16xf32> to vector<16x16xf32>
      %361 = vector.shape_cast %357 : vector<16x16xf32> to vector<1x1x16x16xf32>
      tpu.vector_store %arg7[%c0_106, %358, %c0_107, %c0_108], %361 {strides = array<i32>} : memref<1x289x16x16xf32, #tpu.memory_space<vmem>>, vector<1x1x16x16xf32>,
      %362 = vector.extract_strided_slice %8 {offsets = [0, 8], sizes = [16, 16], strides = [1, 1]} : vector<16x32xf32> to vector<16x16xf32>
      %363 = arith.mulf %233, %362 : vector<16x16xf32>
      %c17_i32_109 = arith.constant 17 : i32
      %364 = arith.muli %3, %c17_i32_109 : i32
      %c8_i32 = arith.constant 8 : i32
      %365 = arith.addi %364, %c8_i32 : i32
      %c0_110 = arith.constant 0 : index
      %366 = arith.index_cast %365 : i32 to index
      %c0_111 = arith.constant 0 : index
      %c0_112 = arith.constant 0 : index
      %367 = vector.load %arg6[%c0_110, %366, %c0_111, %c0_112] : memref<1x289x16x16xf32, #tpu.memory_space<vmem>>, vector<1x1x16x16xf32>
      %368 = vector.shape_cast %367 : vector<1x1x16x16xf32> to vector<16x16xf32>
      %369 = vector.shape_cast %363 : vector<16x16xf32> to vector<1x1x16x16xf32>
      tpu.vector_store %arg6[%c0_110, %366, %c0_111, %c0_112], %369 {strides = array<i32>} : memref<1x289x16x16xf32, #tpu.memory_space<vmem>>, vector<1x1x16x16xf32>,
      %370 = arith.subf %233, %363 : vector<16x16xf32>
      %c0_113 = arith.constant 0 : index
      %371 = arith.index_cast %365 : i32 to index
      %c0_114 = arith.constant 0 : index
      %c0_115 = arith.constant 0 : index
      %372 = vector.load %arg7[%c0_113, %371, %c0_114, %c0_115] : memref<1x289x16x16xf32, #tpu.memory_space<vmem>>, vector<1x1x16x16xf32>
      %373 = vector.shape_cast %372 : vector<1x1x16x16xf32> to vector<16x16xf32>
      %374 = vector.shape_cast %370 : vector<16x16xf32> to vector<1x1x16x16xf32>
      tpu.vector_store %arg7[%c0_113, %371, %c0_114, %c0_115], %374 {strides = array<i32>} : memref<1x289x16x16xf32, #tpu.memory_space<vmem>>, vector<1x1x16x16xf32>,
      %375 = vector.extract_strided_slice %8 {offsets = [0, 9], sizes = [16, 16], strides = [1, 1]} : vector<16x32xf32> to vector<16x16xf32>
      %376 = arith.mulf %236, %375 : vector<16x16xf32>
      %c17_i32_116 = arith.constant 17 : i32
      %377 = arith.muli %3, %c17_i32_116 : i32
      %c9_i32 = arith.constant 9 : i32
      %378 = arith.addi %377, %c9_i32 : i32
      %c0_117 = arith.constant 0 : index
      %379 = arith.index_cast %378 : i32 to index
      %c0_118 = arith.constant 0 : index
      %c0_119 = arith.constant 0 : index
      %380 = vector.load %arg6[%c0_117, %379, %c0_118, %c0_119] : memref<1x289x16x16xf32, #tpu.memory_space<vmem>>, vector<1x1x16x16xf32>
      %381 = vector.shape_cast %380 : vector<1x1x16x16xf32> to vector<16x16xf32>
      %382 = vector.shape_cast %376 : vector<16x16xf32> to vector<1x1x16x16xf32>
      tpu.vector_store %arg6[%c0_117, %379, %c0_118, %c0_119], %382 {strides = array<i32>} : memref<1x289x16x16xf32, #tpu.memory_space<vmem>>, vector<1x1x16x16xf32>,
      %383 = arith.subf %236, %376 : vector<16x16xf32>
      %c0_120 = arith.constant 0 : index
      %384 = arith.index_cast %378 : i32 to index
      %c0_121 = arith.constant 0 : index
      %c0_122 = arith.constant 0 : index
      %385 = vector.load %arg7[%c0_120, %384, %c0_121, %c0_122] : memref<1x289x16x16xf32, #tpu.memory_space<vmem>>, vector<1x1x16x16xf32>
      %386 = vector.shape_cast %385 : vector<1x1x16x16xf32> to vector<16x16xf32>
      %387 = vector.shape_cast %383 : vector<16x16xf32> to vector<1x1x16x16xf32>
      tpu.vector_store %arg7[%c0_120, %384, %c0_121, %c0_122], %387 {strides = array<i32>} : memref<1x289x16x16xf32, #tpu.memory_space<vmem>>, vector<1x1x16x16xf32>,
      %388 = vector.extract_strided_slice %8 {offsets = [0, 10], sizes = [16, 16], strides = [1, 1]} : vector<16x32xf32> to vector<16x16xf32>
      %389 = arith.mulf %239, %388 : vector<16x16xf32>
      %c17_i32_123 = arith.constant 17 : i32
      %390 = arith.muli %3, %c17_i32_123 : i32
      %c10_i32 = arith.constant 10 : i32
      %391 = arith.addi %390, %c10_i32 : i32
      %c0_124 = arith.constant 0 : index
      %392 = arith.index_cast %391 : i32 to index
      %c0_125 = arith.constant 0 : index
      %c0_126 = arith.constant 0 : index
      %393 = vector.load %arg6[%c0_124, %392, %c0_125, %c0_126] : memref<1x289x16x16xf32, #tpu.memory_space<vmem>>, vector<1x1x16x16xf32>
      %394 = vector.shape_cast %393 : vector<1x1x16x16xf32> to vector<16x16xf32>
      %395 = vector.shape_cast %389 : vector<16x16xf32> to vector<1x1x16x16xf32>
      tpu.vector_store %arg6[%c0_124, %392, %c0_125, %c0_126], %395 {strides = array<i32>} : memref<1x289x16x16xf32, #tpu.memory_space<vmem>>, vector<1x1x16x16xf32>,
      %396 = arith.subf %239, %389 : vector<16x16xf32>
      %c0_127 = arith.constant 0 : index
      %397 = arith.index_cast %391 : i32 to index
      %c0_128 = arith.constant 0 : index
      %c0_129 = arith.constant 0 : index
      %398 = vector.load %arg7[%c0_127, %397, %c0_128, %c0_129] : memref<1x289x16x16xf32, #tpu.memory_space<vmem>>, vector<1x1x16x16xf32>
      %399 = vector.shape_cast %398 : vector<1x1x16x16xf32> to vector<16x16xf32>
      %400 = vector.shape_cast %396 : vector<16x16xf32> to vector<1x1x16x16xf32>
      tpu.vector_store %arg7[%c0_127, %397, %c0_128, %c0_129], %400 {strides = array<i32>} : memref<1x289x16x16xf32, #tpu.memory_space<vmem>>, vector<1x1x16x16xf32>,
      %401 = vector.extract_strided_slice %8 {offsets = [0, 11], sizes = [16, 16], strides = [1, 1]} : vector<16x32xf32> to vector<16x16xf32>
      %402 = arith.mulf %242, %401 : vector<16x16xf32>
      %c17_i32_130 = arith.constant 17 : i32
      %403 = arith.muli %3, %c17_i32_130 : i32
      %c11_i32 = arith.constant 11 : i32
      %404 = arith.addi %403, %c11_i32 : i32
      %c0_131 = arith.constant 0 : index
      %405 = arith.index_cast %404 : i32 to index
      %c0_132 = arith.constant 0 : index
      %c0_133 = arith.constant 0 : index
      %406 = vector.load %arg6[%c0_131, %405, %c0_132, %c0_133] : memref<1x289x16x16xf32, #tpu.memory_space<vmem>>, vector<1x1x16x16xf32>
      %407 = vector.shape_cast %406 : vector<1x1x16x16xf32> to vector<16x16xf32>
      %408 = vector.shape_cast %402 : vector<16x16xf32> to vector<1x1x16x16xf32>
      tpu.vector_store %arg6[%c0_131, %405, %c0_132, %c0_133], %408 {strides = array<i32>} : memref<1x289x16x16xf32, #tpu.memory_space<vmem>>, vector<1x1x16x16xf32>,
      %409 = arith.subf %242, %402 : vector<16x16xf32>
      %c0_134 = arith.constant 0 : index
      %410 = arith.index_cast %404 : i32 to index
      %c0_135 = arith.constant 0 : index
      %c0_136 = arith.constant 0 : index
      %411 = vector.load %arg7[%c0_134, %410, %c0_135, %c0_136] : memref<1x289x16x16xf32, #tpu.memory_space<vmem>>, vector<1x1x16x16xf32>
      %412 = vector.shape_cast %411 : vector<1x1x16x16xf32> to vector<16x16xf32>
      %413 = vector.shape_cast %409 : vector<16x16xf32> to vector<1x1x16x16xf32>
      tpu.vector_store %arg7[%c0_134, %410, %c0_135, %c0_136], %413 {strides = array<i32>} : memref<1x289x16x16xf32, #tpu.memory_space<vmem>>, vector<1x1x16x16xf32>,
      %414 = vector.extract_strided_slice %8 {offsets = [0, 12], sizes = [16, 16], strides = [1, 1]} : vector<16x32xf32> to vector<16x16xf32>
      %415 = arith.mulf %245, %414 : vector<16x16xf32>
      %c17_i32_137 = arith.constant 17 : i32
      %416 = arith.muli %3, %c17_i32_137 : i32
      %c12_i32 = arith.constant 12 : i32
      %417 = arith.addi %416, %c12_i32 : i32
      %c0_138 = arith.constant 0 : index
      %418 = arith.index_cast %417 : i32 to index
      %c0_139 = arith.constant 0 : index
      %c0_140 = arith.constant 0 : index
      %419 = vector.load %arg6[%c0_138, %418, %c0_139, %c0_140] : memref<1x289x16x16xf32, #tpu.memory_space<vmem>>, vector<1x1x16x16xf32>
      %420 = vector.shape_cast %419 : vector<1x1x16x16xf32> to vector<16x16xf32>
      %421 = vector.shape_cast %415 : vector<16x16xf32> to vector<1x1x16x16xf32>
      tpu.vector_store %arg6[%c0_138, %418, %c0_139, %c0_140], %421 {strides = array<i32>} : memref<1x289x16x16xf32, #tpu.memory_space<vmem>>, vector<1x1x16x16xf32>,
      %422 = arith.subf %245, %415 : vector<16x16xf32>
      %c0_141 = arith.constant 0 : index
      %423 = arith.index_cast %417 : i32 to index
      %c0_142 = arith.constant 0 : index
      %c0_143 = arith.constant 0 : index
      %424 = vector.load %arg7[%c0_141, %423, %c0_142, %c0_143] : memref<1x289x16x16xf32, #tpu.memory_space<vmem>>, vector<1x1x16x16xf32>
      %425 = vector.shape_cast %424 : vector<1x1x16x16xf32> to vector<16x16xf32>
      %426 = vector.shape_cast %422 : vector<16x16xf32> to vector<1x1x16x16xf32>
      tpu.vector_store %arg7[%c0_141, %423, %c0_142, %c0_143], %426 {strides = array<i32>} : memref<1x289x16x16xf32, #tpu.memory_space<vmem>>, vector<1x1x16x16xf32>,
      %427 = vector.extract_strided_slice %8 {offsets = [0, 13], sizes = [16, 16], strides = [1, 1]} : vector<16x32xf32> to vector<16x16xf32>
      %428 = arith.mulf %248, %427 : vector<16x16xf32>
      %c17_i32_144 = arith.constant 17 : i32
      %429 = arith.muli %3, %c17_i32_144 : i32
      %c13_i32 = arith.constant 13 : i32
      %430 = arith.addi %429, %c13_i32 : i32
      %c0_145 = arith.constant 0 : index
      %431 = arith.index_cast %430 : i32 to index
      %c0_146 = arith.constant 0 : index
      %c0_147 = arith.constant 0 : index
      %432 = vector.load %arg6[%c0_145, %431, %c0_146, %c0_147] : memref<1x289x16x16xf32, #tpu.memory_space<vmem>>, vector<1x1x16x16xf32>
      %433 = vector.shape_cast %432 : vector<1x1x16x16xf32> to vector<16x16xf32>
      %434 = vector.shape_cast %428 : vector<16x16xf32> to vector<1x1x16x16xf32>
      tpu.vector_store %arg6[%c0_145, %431, %c0_146, %c0_147], %434 {strides = array<i32>} : memref<1x289x16x16xf32, #tpu.memory_space<vmem>>, vector<1x1x16x16xf32>,
      %435 = arith.subf %248, %428 : vector<16x16xf32>
      %c0_148 = arith.constant 0 : index
      %436 = arith.index_cast %430 : i32 to index
      %c0_149 = arith.constant 0 : index
      %c0_150 = arith.constant 0 : index
      %437 = vector.load %arg7[%c0_148, %436, %c0_149, %c0_150] : memref<1x289x16x16xf32, #tpu.memory_space<vmem>>, vector<1x1x16x16xf32>
      %438 = vector.shape_cast %437 : vector<1x1x16x16xf32> to vector<16x16xf32>
      %439 = vector.shape_cast %435 : vector<16x16xf32> to vector<1x1x16x16xf32>
      tpu.vector_store %arg7[%c0_148, %436, %c0_149, %c0_150], %439 {strides = array<i32>} : memref<1x289x16x16xf32, #tpu.memory_space<vmem>>, vector<1x1x16x16xf32>,
      %440 = vector.extract_strided_slice %8 {offsets = [0, 14], sizes = [16, 16], strides = [1, 1]} : vector<16x32xf32> to vector<16x16xf32>
      %441 = arith.mulf %251, %440 : vector<16x16xf32>
      %c17_i32_151 = arith.constant 17 : i32
      %442 = arith.muli %3, %c17_i32_151 : i32
      %c14_i32 = arith.constant 14 : i32
      %443 = arith.addi %442, %c14_i32 : i32
      %c0_152 = arith.constant 0 : index
      %444 = arith.index_cast %443 : i32 to index
      %c0_153 = arith.constant 0 : index
      %c0_154 = arith.constant 0 : index
      %445 = vector.load %arg6[%c0_152, %444, %c0_153, %c0_154] : memref<1x289x16x16xf32, #tpu.memory_space<vmem>>, vector<1x1x16x16xf32>
      %446 = vector.shape_cast %445 : vector<1x1x16x16xf32> to vector<16x16xf32>
      %447 = vector.shape_cast %441 : vector<16x16xf32> to vector<1x1x16x16xf32>
      tpu.vector_store %arg6[%c0_152, %444, %c0_153, %c0_154], %447 {strides = array<i32>} : memref<1x289x16x16xf32, #tpu.memory_space<vmem>>, vector<1x1x16x16xf32>,
      %448 = arith.subf %251, %441 : vector<16x16xf32>
      %c0_155 = arith.constant 0 : index
      %449 = arith.index_cast %443 : i32 to index
      %c0_156 = arith.constant 0 : index
      %c0_157 = arith.constant 0 : index
      %450 = vector.load %arg7[%c0_155, %449, %c0_156, %c0_157] : memref<1x289x16x16xf32, #tpu.memory_space<vmem>>, vector<1x1x16x16xf32>
      %451 = vector.shape_cast %450 : vector<1x1x16x16xf32> to vector<16x16xf32>
      %452 = vector.shape_cast %448 : vector<16x16xf32> to vector<1x1x16x16xf32>
      tpu.vector_store %arg7[%c0_155, %449, %c0_156, %c0_157], %452 {strides = array<i32>} : memref<1x289x16x16xf32, #tpu.memory_space<vmem>>, vector<1x1x16x16xf32>,
      %453 = vector.extract_strided_slice %8 {offsets = [0, 15], sizes = [16, 16], strides = [1, 1]} : vector<16x32xf32> to vector<16x16xf32>
      %454 = arith.mulf %254, %453 : vector<16x16xf32>
      %c17_i32_158 = arith.constant 17 : i32
      %455 = arith.muli %3, %c17_i32_158 : i32
      %c15_i32 = arith.constant 15 : i32
      %456 = arith.addi %455, %c15_i32 : i32
      %c0_159 = arith.constant 0 : index
      %457 = arith.index_cast %456 : i32 to index
      %c0_160 = arith.constant 0 : index
      %c0_161 = arith.constant 0 : index
      %458 = vector.load %arg6[%c0_159, %457, %c0_160, %c0_161] : memref<1x289x16x16xf32, #tpu.memory_space<vmem>>, vector<1x1x16x16xf32>
      %459 = vector.shape_cast %458 : vector<1x1x16x16xf32> to vector<16x16xf32>
      %460 = vector.shape_cast %454 : vector<16x16xf32> to vector<1x1x16x16xf32>
      tpu.vector_store %arg6[%c0_159, %457, %c0_160, %c0_161], %460 {strides = array<i32>} : memref<1x289x16x16xf32, #tpu.memory_space<vmem>>, vector<1x1x16x16xf32>,
      %461 = arith.subf %254, %454 : vector<16x16xf32>
      %c0_162 = arith.constant 0 : index
      %462 = arith.index_cast %456 : i32 to index
      %c0_163 = arith.constant 0 : index
      %c0_164 = arith.constant 0 : index
      %463 = vector.load %arg7[%c0_162, %462, %c0_163, %c0_164] : memref<1x289x16x16xf32, #tpu.memory_space<vmem>>, vector<1x1x16x16xf32>
      %464 = vector.shape_cast %463 : vector<1x1x16x16xf32> to vector<16x16xf32>
      %465 = vector.shape_cast %461 : vector<16x16xf32> to vector<1x1x16x16xf32>
      tpu.vector_store %arg7[%c0_162, %462, %c0_163, %c0_164], %465 {strides = array<i32>} : memref<1x289x16x16xf32, #tpu.memory_space<vmem>>, vector<1x1x16x16xf32>,
      %466 = vector.extract_strided_slice %8 {offsets = [0, 16], sizes = [16, 16], strides = [1, 1]} : vector<16x32xf32> to vector<16x16xf32>
      %467 = arith.mulf %257, %466 : vector<16x16xf32>
      %c17_i32_165 = arith.constant 17 : i32
      %468 = arith.muli %3, %c17_i32_165 : i32
      %c16_i32_166 = arith.constant 16 : i32
      %469 = arith.addi %468, %c16_i32_166 : i32
      %c0_167 = arith.constant 0 : index
      %470 = arith.index_cast %469 : i32 to index
      %c0_168 = arith.constant 0 : index
      %c0_169 = arith.constant 0 : index
      %471 = vector.load %arg6[%c0_167, %470, %c0_168, %c0_169] : memref<1x289x16x16xf32, #tpu.memory_space<vmem>>, vector<1x1x16x16xf32>
      %472 = vector.shape_cast %471 : vector<1x1x16x16xf32> to vector<16x16xf32>
      %473 = vector.shape_cast %467 : vector<16x16xf32> to vector<1x1x16x16xf32>
      tpu.vector_store %arg6[%c0_167, %470, %c0_168, %c0_169], %473 {strides = array<i32>} : memref<1x289x16x16xf32, #tpu.memory_space<vmem>>, vector<1x1x16x16xf32>,
      %474 = arith.subf %257, %467 : vector<16x16xf32>
      %c0_170 = arith.constant 0 : index
      %475 = arith.index_cast %469 : i32 to index
      %c0_171 = arith.constant 0 : index
      %c0_172 = arith.constant 0 : index
      %476 = vector.load %arg7[%c0_170, %475, %c0_171, %c0_172] : memref<1x289x16x16xf32, #tpu.memory_space<vmem>>, vector<1x1x16x16xf32>
      %477 = vector.shape_cast %476 : vector<1x1x16x16xf32> to vector<16x16xf32>
      %478 = vector.shape_cast %474 : vector<16x16xf32> to vector<1x1x16x16xf32>
      tpu.vector_store %arg7[%c0_170, %475, %c0_171, %c0_172], %478 {strides = array<i32>} : memref<1x289x16x16xf32, #tpu.memory_space<vmem>>, vector<1x1x16x16xf32>,
    }
    %c17_i32_1 = arith.constant 17 : i32
    return
  }
  func.func @transform_0(%arg0: i32, %arg1: i32, %arg2: i32) -> (i32, i32, i32, i32) {
    %c0_i32 = arith.constant 0 : i32
    %c0_i32_0 = arith.constant 0 : i32
    %c0_i32_1 = arith.constant 0 : i32
    return %arg0, %c0_i32, %arg1, %c0_i32_0 : i32, i32, i32, i32
  }
  func.func @transform_1(%arg0: i32, %arg1: i32, %arg2: i32) -> (i32, i32, i32, i32, i32) {
    %c0_i32 = arith.constant 0 : i32
    %c0_i32_0 = arith.constant 0 : i32
    %c0_i32_1 = arith.constant 0 : i32
    %c0_i32_2 = arith.constant 0 : i32
    return %arg0, %arg1, %c0_i32, %c0_i32_0, %c0_i32_1 : i32, i32, i32, i32, i32
  }
  func.func @transform_2(%arg0: i32, %arg1: i32, %arg2: i32) -> (i32, i32, i32, i32) {
    %c0_i32 = arith.constant 0 : i32
    %c0_i32_0 = arith.constant 0 : i32
    %c0_i32_1 = arith.constant 0 : i32
    return %arg0, %arg1, %c0_i32, %c0_i32_0 : i32, i32, i32, i32
  }
  func.func @transform_3(%arg0: i32, %arg1: i32, %arg2: i32) -> (i32, i32, i32, i32) {
    %c0_i32 = arith.constant 0 : i32
    %c0_i32_0 = arith.constant 0 : i32
    return %arg0, %arg2, %arg1, %c0_i32 : i32, i32, i32, i32
  }
  func.func @transform_4(%arg0: i32, %arg1: i32, %arg2: i32) -> (i32, i32, i32, i32) {
    %c0_i32 = arith.constant 0 : i32
    %c0_i32_0 = arith.constant 0 : i32
    return %arg0, %arg2, %arg1, %c0_i32 : i32, i32, i32, i32
  }
}

</mosaic_0001>

<llo_original>
// kernel: local_forward.1
$region0: #{local_forward.1}
  #allocation0 [shape = 'u32[]', space=smem, size = 0x4, offset = 0x4, fixed_abs, tag = 'smem constant byte address 0x4 - core index']
  #allocation1 [shape = 'u32[144,128]{1,0:T(1,128)}', space=vmem, size = 0x12000, scoped, tag = 'internal scratch']
  %s0 = inlined_call_operand.vmem [shape: f32[2,4,16,16], index: 0, kind: input, shape index: {}]
  %s1 = inlined_call_operand.vmem [shape: f32[2,1,4,32,32], index: 1, kind: input, shape index: {}]
  %s2 = inlined_call_operand.vmem [shape: f32[2,1,32,32], index: 2, kind: input, shape index: {}]
  %s3 = inlined_call_operand.vmem [shape: f32[2,289,16,16], index: 3, kind: output, shape index: {0}]
  %s4 = inlined_call_operand.vmem [shape: f32[2,289,16,16], index: 4, kind: output, shape index: {1}]
  %5 = xla_tuple %s3, %s4
  %s6 = sld [smem:[#allocation0]]
  $region60: #{local_forward.1} parent=0
    _
  %s8 = ssub.s32 1, %s6
  %s9 = scalar_select 0, %s8, %s6
  loop: start=0, step=1, limit=4
  $region2: #{local_forward.1} parent=0 // loop_pre_header
    _
  $region3: #{local_forward.1} parent=0 // loop_header
    %s11 = sphi 0, %s15
    %p12 = scmp.ge.s32.totalorder %s11, 4
    %s18 = sphi 0, %s37
    %s19 = sphi 0, %s33
    %s20 = sphi 0, %s29
    %s21 = sphi 0, %s18
    %s22 = sphi 0, %s19
    %s23 = sphi 0, %s20
    %s24 = sphi 0, %s21
    %s25 = sphi 0, %s22
    %s26 = sphi 0, %s23
    %s42 = sphi 0, %s44
    %s45 = sphi 0, %s42
    %s46 = sphi 0, %s45
    %s62 = sphi 0, %s46
    %s70 = sphi 0, %s72
    %s73 = sphi 0, %s70
    %s74 = sphi 0, %s73
    %s90 = sphi 0, %s74
    %s98 = sphi 0, %s100
    %s101 = sphi 0, %s98
    %s102 = sphi 0, %s101
    %s118 = sphi 0, %s102
    %s128 = sphi 0, %s130
    %s131 = sphi 0, %s128
    %s132 = sphi 0, %s131
    %s148 = sphi 0, %s132
    %s158 = sphi 0, %s160
    %s161 = sphi 0, %s158
    %s162 = sphi 0, %s161
    %s178 = sphi 0, %s162
  $region4: #{local_forward.1} parent=0 // loop_header_branch
    %14 = sbr.rel (%p12) target = $region8
  $region5: #{local_forward.1} parent=0 // loop_body
    %s16 = ssub.s32 %s11, 1
    %s17 = ssub.s32 %s11, 2
    %s27 = sadd.s32 1, %s20
    %p28 = scmp.ge.s32.totalorder %s27, 1
    %s29 = scalar_select %p28, 0, %s27
    %s30 = sadd.s32 1, %s19
    %s31 = scalar_select %p28, %s30, %s19
    %p32 = scmp.ge.s32.totalorder %s31, 1
    %s33 = scalar_select %p32, 0, %s31
    %s34 = sadd.s32 1, %s18
    %s35 = scalar_select %p32, %s34, %s18
    %p36 = scmp.ge.s32.totalorder %s35, 2
    %s37 = scalar_select %p36, 0, %s35
    %s38 = ssub.s32 %s18, %s37
    %s39 = ssub.s32 %s19, %s33
    %s40 = sor.u32 %s38, %s39
    %p41 = scmp.eq.s32.totalorder %s40, 0
    %s43 = sadd.s32 %s42, 1
    %s44 = scalar_select %p41, %s42, %s43
    %p47 = pneg %p41
    %p48 = scmp.eq.s32.totalorder %s11, 1
    %p49 = por %p47, %p48
    %p50 = scmp.ne.s32.totalorder %s42, %s45
    %p51 = scmp.eq.s32.totalorder %s11, 0
    %p52 = por %p50, %p51
    %p53 = scmp.ne.s32.totalorder %s42, %s45
    %p54 = scmp.eq.s32.totalorder %s16, 1
    %p55 = por %p53, %p54
    %p56 = scmp.ne.s32.totalorder %s45, %s46
    %p57 = scmp.eq.s32.totalorder %s16, 0
    %p58 = por %p56, %p57
    %p59 = scmp.ne.s32.totalorder %s45, %s46
    %p60 = scmp.eq.s32.totalorder %s17, 1
    %p61 = por %p59, %p60
    %p63 = scmp.ne.s32.totalorder %s46, %s62
    %p64 = scmp.eq.s32.totalorder %s17, 0
    %p65 = por %p63, %p64
    %s66 = ssub.s32 %s18, %s37
    %s67 = ssub.s32 %s19, %s33
    %s68 = sor.u32 %s66, %s67
    %p69 = scmp.eq.s32.totalorder %s68, 0
    %s71 = sadd.s32 %s70, 1
    %s72 = scalar_select %p69, %s70, %s71
    %p75 = pneg %p69
    %p76 = scmp.eq.s32.totalorder %s11, 1
    %p77 = por %p75, %p76
    %p78 = scmp.ne.s32.totalorder %s70, %s73
    %p79 = scmp.eq.s32.totalorder %s11, 0
    %p80 = por %p78, %p79
    %p81 = scmp.ne.s32.totalorder %s70, %s73
    %p82 = scmp.eq.s32.totalorder %s16, 1
    %p83 = por %p81, %p82
    %p84 = scmp.ne.s32.totalorder %s73, %s74
    %p85 = scmp.eq.s32.totalorder %s16, 0
    %p86 = por %p84, %p85
    %p87 = scmp.ne.s32.totalorder %s73, %s74
    %p88 = scmp.eq.s32.totalorder %s17, 1
    %p89 = por %p87, %p88
    %p91 = scmp.ne.s32.totalorder %s74, %s90
    %p92 = scmp.eq.s32.totalorder %s17, 0
    %p93 = por %p91, %p92
    %s94 = ssub.s32 %s18, %s37
    %s95 = ssub.s32 %s19, %s33
    %s96 = sor.u32 %s94, %s95
    %p97 = scmp.eq.s32.totalorder %s96, 0
    %s99 = sadd.s32 %s98, 1
    %s100 = scalar_select %p97, %s98, %s99
    %p103 = pneg %p97
    %p104 = scmp.eq.s32.totalorder %s11, 1
    %p105 = por %p103, %p104
    %p106 = scmp.ne.s32.totalorder %s98, %s101
    %p107 = scmp.eq.s32.totalorder %s11, 0
    %p108 = por %p106, %p107
    %p109 = scmp.ne.s32.totalorder %s98, %s101
    %p110 = scmp.eq.s32.totalorder %s16, 1
    %p111 = por %p109, %p110
    %p112 = scmp.ne.s32.totalorder %s101, %s102
    %p113 = scmp.eq.s32.totalorder %s16, 0
    %p114 = por %p112, %p113
    %p115 = scmp.ne.s32.totalorder %s101, %s102
    %p116 = scmp.eq.s32.totalorder %s17, 1
    %p117 = por %p115, %p116
    %p119 = scmp.ne.s32.totalorder %s102, %s118
    %p120 = scmp.eq.s32.totalorder %s17, 0
    %p121 = por %p119, %p120
    %s122 = ssub.s32 %s18, %s37
    %s123 = ssub.s32 %s20, %s29
    %s124 = sor.u32 %s122, %s123
    %s125 = ssub.s32 %s19, %s33
    %s126 = sor.u32 %s124, %s125
    %p127 = scmp.eq.s32.totalorder %s126, 0
    %s129 = sadd.s32 %s128, 1
    %s130 = scalar_select %p127, %s128, %s129
    %p133 = pneg %p127
    %p134 = scmp.eq.s32.totalorder %s11, 1
    %p135 = por %p133, %p134
    %p136 = scmp.ne.s32.totalorder %s128, %s131
    %p137 = scmp.eq.s32.totalorder %s11, 0
    %p138 = por %p136, %p137
    %p139 = scmp.ne.s32.totalorder %s128, %s131
    %p140 = scmp.eq.s32.totalorder %s16, 1
    %p141 = por %p139, %p140
    %p142 = scmp.ne.s32.totalorder %s131, %s132
    %p143 = scmp.eq.s32.totalorder %s16, 0
    %p144 = por %p142, %p143
    %p145 = scmp.ne.s32.totalorder %s131, %s132
    %p146 = scmp.eq.s32.totalorder %s17, 1
    %p147 = por %p145, %p146
    %p149 = scmp.ne.s32.totalorder %s132, %s148
    %p150 = scmp.eq.s32.totalorder %s17, 0
    %p151 = por %p149, %p150
    %s152 = ssub.s32 %s18, %s37
    %s153 = ssub.s32 %s20, %s29
    %s154 = sor.u32 %s152, %s153
    %s155 = ssub.s32 %s19, %s33
    %s156 = sor.u32 %s154, %s155
    %p157 = scmp.eq.s32.totalorder %s156, 0
    %s159 = sadd.s32 %s158, 1
    %s160 = scalar_select %p157, %s158, %s159
    %p163 = pneg %p157
    %p164 = scmp.eq.s32.totalorder %s11, 1
    %p165 = por %p163, %p164
    %p166 = scmp.ne.s32.totalorder %s158, %s161
    %p167 = scmp.eq.s32.totalorder %s11, 0
    %p168 = por %p166, %p167
    %p169 = scmp.ne.s32.totalorder %s158, %s161
    %p170 = scmp.eq.s32.totalorder %s16, 1
    %p171 = por %p169, %p170
    %p172 = scmp.ne.s32.totalorder %s161, %s162
    %p173 = scmp.eq.s32.totalorder %s16, 0
    %p174 = por %p172, %p173
    %p175 = scmp.ne.s32.totalorder %s161, %s162
    %p176 = scmp.eq.s32.totalorder %s17, 1
    %p177 = por %p175, %p176
    %p179 = scmp.ne.s32.totalorder %s162, %s178
    %p180 = scmp.eq.s32.totalorder %s17, 0
    %p181 = por %p179, %p180
    %p182 = scmp.le.s32.totalorder 1, %s11
    %p183 = scmp.lt.s32.totalorder %s11, 3
    %p184 = pnand %p182, %p183
    %p185 = pneg %p184
    // Predicated region
    $region9: #{local_forward.1} parent=5 // pred_check
      _
    $region10: #{local_forward.1} parent=5 // pred_check_branch
      %187 = sbr.rel (%p184) target = $region12
    $region11: #{local_forward.1} parent=5 // pred_region
      %s188 = ssub.s32 %s11, 1
    $region12: #{local_forward.1} parent=5 // pred_fallthru
      _
    %p189 = scmp.lt.s32.totalorder %s11, 2
    // Predicated region
    $region13: #{local_forward.1} parent=5 // pred_check
      %p190 = pneg %p189
    $region14: #{local_forward.1} parent=5 // pred_check_branch
      %192 = sbr.rel (%p190) target = $region16
    $region15: #{local_forward.1} parent=5 // pred_region
      // Predicated region
      $region17: #{local_forward.1} parent=15 // pred_check
        %p193 = pneg %p52
      $region18: #{local_forward.1} parent=15 // pred_check_branch
        %195 = sbr.rel (%p193) target = $region20
      $region19: #{local_forward.1} parent=15 // pred_region
        %s196 = smul.u32 2, %s19
        %p197 = scmp.lt.s32.totalorder %s18, 1
        %s198 = scalar_select %p197, %s18, 1
        %p199 = scmp.lt.s32.totalorder %s196, 1
        %s200 = scalar_select %p199, %s196, 1
        %s201 = smul.addr %s198, 8
        %s202 = sadd.s32 %s200, %s201
        %s203 = smul.addr %s202, 8
        %s204 = scalar_lea.vmem %s0, %s203
        %s205 = smul.u32 2, %s19
      $region20: #{local_forward.1} parent=15 // pred_fallthru
        _
      // Predicated region
      $region21: #{local_forward.1} parent=15 // pred_check
        %p206 = pneg %p80
      $region22: #{local_forward.1} parent=15 // pred_check_branch
        %208 = sbr.rel (%p206) target = $region24
      $region23: #{local_forward.1} parent=15 // pred_region
        %p209 = scmp.lt.s32.totalorder %s18, 1
        %s210 = scalar_select %p209, %s18, 1
        %p211 = scmp.lt.s32.totalorder %s19, 0
        %s212 = scalar_select %p211, %s19, 0
        %s213 = smul.addr %s212, 16
        %s214 = smul.addr %s210, 16
        %s215 = sadd.s32 %s213, %s214
        %s216 = smul.addr %s215, 8
        %s217 = scalar_lea.vmem %s1, %s216
      $region24: #{local_forward.1} parent=15 // pred_fallthru
        _
      // Predicated region
      $region25: #{local_forward.1} parent=15 // pred_check
        %p218 = pneg %p108
      $region26: #{local_forward.1} parent=15 // pred_check_branch
        %220 = sbr.rel (%p218) target = $region28
      $region27: #{local_forward.1} parent=15 // pred_region
        %p221 = scmp.lt.s32.totalorder %s18, 1
        %s222 = scalar_select %p221, %s18, 1
        %p223 = scmp.lt.s32.totalorder %s19, 0
        %s224 = scalar_select %p223, %s19, 0
        %s225 = smul.addr %s224, 4
        %s226 = smul.addr %s222, 4
        %s227 = sadd.s32 %s225, %s226
        %s228 = smul.addr %s227, 8
        %s229 = scalar_lea.vmem %s2, %s228
      $region28: #{local_forward.1} parent=15 // pred_fallthru
        _
    $region16: #{local_forward.1} parent=5 // pred_fallthru
      _
    %p230 = scmp.le.s32.totalorder 1, %s11
    %p231 = scmp.lt.s32.totalorder %s11, 3
    %p232 = pnand %p230, %p231
    %p233 = pneg %p232
    // Predicated region
    $region29: #{local_forward.1} parent=5 // pred_check
      _
    $region30: #{local_forward.1} parent=5 // pred_check_branch
      %235 = sbr.rel (%p232) target = $region32
    $region31: #{local_forward.1} parent=5 // pred_region
      %s236 = ssub.s32 %s11, 1
      %s237 = smul.u32 2, %s22
      %p238 = scmp.lt.s32.totalorder %s21, 1
      %s239 = scalar_select %p238, %s21, 1
      %p240 = scmp.lt.s32.totalorder %s237, 1
      %s241 = scalar_select %p240, %s237, 1
      %s242 = smul.addr %s239, 8
      %s243 = sadd.s32 %s241, %s242
      %s244 = smul.addr %s243, 8
      %s245 = scalar_lea.vmem %s0, %s244
      %p246 = pneg %p58
      %p247 = pneg %p55
      %p248 = scmp.lt.s32.totalorder %s21, 1
      %s249 = scalar_select %p248, %s21, 1
      %p250 = scmp.lt.s32.totalorder %s22, 0
      %s251 = scalar_select %p250, %s22, 0
      %s252 = smul.addr %s251, 16
      %s253 = smul.addr %s249, 16
      %s254 = sadd.s32 %s252, %s253
      %s255 = smul.addr %s254, 8
      %s256 = scalar_lea.vmem %s1, %s255
      %p257 = pneg %p86
      %p258 = pneg %p83
      %p259 = scmp.lt.s32.totalorder %s21, 1
      %s260 = scalar_select %p259, %s21, 1
      %p261 = scmp.lt.s32.totalorder %s22, 0
      %s262 = scalar_select %p261, %s22, 0
      %s263 = smul.addr %s262, 4
      %s264 = smul.addr %s260, 4
      %s265 = sadd.s32 %s263, %s264
      %s266 = smul.addr %s265, 8
      %s267 = scalar_lea.vmem %s2, %s266
      %p268 = pneg %p114
      %p269 = pneg %p111
      %p270 = pneg %p144
      %p271 = pneg %p141
      %s272 = smul.u32 289, %s23
      %s273 = smul.u32 2, %s22
      %p274 = scmp.lt.s32.totalorder %s21, 1
      %s275 = scalar_select %p274, %s21, 1
      %p276 = scmp.lt.s32.totalorder %s272, 288
      %s277 = scalar_select %p276, %s272, 288
      %p278 = scmp.lt.s32.totalorder %s273, 1
      %s279 = scalar_select %p278, %s273, 1
      %s280 = smul.addr %s277, 2
      %s281 = sadd.s32 %s279, %s280
      %s282 = smul.addr %s275, 578
      %s283 = sadd.s32 %s281, %s282
      %s284 = smul.addr %s283, 8
      %s285 = scalar_lea.vmem %s3, %s284
      %p286 = pneg %p174
      %p287 = pneg %p171
      %s288 = smul.u32 289, %s23
      %s289 = smul.u32 2, %s22
      %p290 = scmp.lt.s32.totalorder %s21, 1
      %s291 = scalar_select %p290, %s21, 1
      %p292 = scmp.lt.s32.totalorder %s288, 288
      %s293 = scalar_select %p292, %s288, 288
      %p294 = scmp.lt.s32.totalorder %s289, 1
      %s295 = scalar_select %p294, %s289, 1
      %s296 = smul.addr %s293, 2
      %s297 = sadd.s32 %s295, %s296
      %s298 = smul.addr %s291, 578
      %s299 = sadd.s32 %s297, %s298
      %s300 = smul.addr %s299, 8
      %s301 = scalar_lea.vmem %s4, %s300
      %s302 = smul.u32 2, %s22
      %p303 = scmp.lt.s32.totalorder %s21, 1
      %s304 = scalar_select %p303, %s21, 1
      %p305 = scmp.lt.s32.totalorder %s302, 1
      %s306 = scalar_select %p305, %s302, 1
      %s307 = smul.addr %s304, 8
      %s308 = sadd.s32 %s306, %s307
      %s309 = smul.addr %s308, 8
      %s310 = scalar_lea.vmem %s0, %s309
      %s311 = smul.u32 2, %s22
      %p312 = scmp.lt.s32.totalorder %s21, 1
      %s313 = scalar_select %p312, %s21, 1
      %p314 = scmp.lt.s32.totalorder %s22, 0
      %s315 = scalar_select %p314, %s22, 0
      %s316 = smul.addr %s315, 16
      %s317 = smul.addr %s313, 16
      %s318 = sadd.s32 %s316, %s317
      %s319 = smul.addr %s318, 8
      %s320 = scalar_lea.vmem %s1, %s319
      %p321 = scmp.lt.s32.totalorder %s21, 1
      %s322 = scalar_select %p321, %s21, 1
      %p323 = scmp.lt.s32.totalorder %s22, 0
      %s324 = scalar_select %p323, %s22, 0
      %s325 = smul.addr %s324, 4
      %s326 = smul.addr %s322, 4
      %s327 = sadd.s32 %s325, %s326
      %s328 = smul.addr %s327, 8
      %s329 = scalar_lea.vmem %s2, %s328
      %s330 = smul.u32 289, %s23
      %s331 = smul.u32 2, %s22
      %p332 = scmp.lt.s32.totalorder %s21, 1
      %s333 = scalar_select %p332, %s21, 1
      %p334 = scmp.lt.s32.totalorder %s330, 288
      %s335 = scalar_select %p334, %s330, 288
      %p336 = scmp.lt.s32.totalorder %s331, 1
      %s337 = scalar_select %p336, %s331, 1
      %s338 = smul.addr %s335, 2
      %s339 = sadd.s32 %s337, %s338
      %s340 = smul.addr %s333, 578
      %s341 = sadd.s32 %s339, %s340
      %s342 = smul.addr %s341, 8
      %s343 = scalar_lea.vmem %s3, %s342
      %s344 = smul.u32 289, %s23
      %s345 = smul.u32 2, %s22
      %s346 = smul.u32 289, %s23
      %s347 = smul.u32 2, %s22
      %p348 = scmp.lt.s32.totalorder %s21, 1
      %s349 = scalar_select %p348, %s21, 1
      %p350 = scmp.lt.s32.totalorder %s346, 288
      %s351 = scalar_select %p350, %s346, 288
      %p352 = scmp.lt.s32.totalorder %s347, 1
      %s353 = scalar_select %p352, %s347, 1
      %s354 = smul.addr %s351, 2
      %s355 = sadd.s32 %s353, %s354
      %s356 = smul.addr %s349, 578
      %s357 = sadd.s32 %s355, %s356
      %s358 = smul.addr %s357, 8
      %s359 = scalar_lea.vmem %s4, %s358
      %s360 = smul.u32 289, %s23
      %s361 = smul.u32 2, %s22
      %s362 = smul.u32 %s23, 17
      loop: start=0, step=1, limit=17
      $region33: #{local_forward.1} parent=31 // loop_pre_header
        _
      $region34: #{local_forward.1} parent=31 // loop_header
        %s364 = sphi 0, %s368
        %p365 = scmp.ge.s32.totalorder %s364, 17
      $region35: #{local_forward.1} parent=31 // loop_header_branch
        %367 = sbr.rel (%p365) target = $region39
      $region36: #{local_forward.1} parent=31 // loop_body
        %s369 = sadd.s32 %s362, %s364
        %p370 = scmp.lt.s32.totalorder %s369, 16
        %s371 = scalar_select %p370, %s369, 16
        %s372 = scalar_lea.vmem %s329, %s371
        %v373 = vld [vmem:[%s372] sm:$0xff]
        %v374 = vld [vmem:[%s372 + $0x8] sm:$0xff]
        %v375 = vld [vmem:[%s310] sm:$0xff]
        %v376 = vld [vmem:[%s310 + $0x8] sm:$0xff]
        %s377 = scalar_lea.vmem %s320, %s371
        %v378 = vld [vmem:[%s377] sm:$0xff]
        %v379 = vld [vmem:[%s377 + $0x8] sm:$0xff]
        %v380 = vmul.f32 %v375, %v378
        %v381 = vmul.f32 %v376, %v379
        %v382 = vadd.f32 %v380, 0.0
        %v383 = vadd.f32 %v381, 0.0
        %386 = vrot.lane.b32.xlu0 %v378, 127
        %v387 = vpop.permute.xlu0 %386
        %388 = vrot.lane.b32.xlu0 %v379, 127
        %v389 = vpop.permute.xlu0 %388
        %v392 = vmul.f32 %v375, %v387
        %v393 = vmul.f32 %v376, %v389
        %v394 = vadd.f32 %v392, 0.0
        %v395 = vadd.f32 %v393, 0.0
        %396 = vrot.lane.b32.xlu0 %v378, 126
        %v397 = vpop.permute.xlu0 %396
        %398 = vrot.lane.b32.xlu0 %v379, 126
        %v399 = vpop.permute.xlu0 %398
        %v402 = vmul.f32 %v375, %v397
        %v403 = vmul.f32 %v376, %v399
        %v404 = vadd.f32 %v402, 0.0
        %v405 = vadd.f32 %v403, 0.0
        %406 = vrot.lane.b32.xlu0 %v378, 125
        %v407 = vpop.permute.xlu0 %406
        %408 = vrot.lane.b32.xlu0 %v379, 125
        %v409 = vpop.permute.xlu0 %408
        %v412 = vmul.f32 %v375, %v407
        %v413 = vmul.f32 %v376, %v409
        %v414 = vadd.f32 %v412, 0.0
        %v415 = vadd.f32 %v413, 0.0
        %416 = vrot.lane.b32.xlu0 %v378, 124
        %v417 = vpop.permute.xlu0 %416
        %418 = vrot.lane.b32.xlu0 %v379, 124
        %v419 = vpop.permute.xlu0 %418
        %v422 = vmul.f32 %v375, %v417
        %v423 = vmul.f32 %v376, %v419
        %v424 = vadd.f32 %v422, 0.0
        %v425 = vadd.f32 %v423, 0.0
        %426 = vrot.lane.b32.xlu0 %v378, 123
        %v427 = vpop.permute.xlu0 %426
        %428 = vrot.lane.b32.xlu0 %v379, 123
        %v429 = vpop.permute.xlu0 %428
        %v432 = vmul.f32 %v375, %v427
        %v433 = vmul.f32 %v376, %v429
        %v434 = vadd.f32 %v432, 0.0
        %v435 = vadd.f32 %v433, 0.0
        %436 = vrot.lane.b32.xlu0 %v378, 122
        %v437 = vpop.permute.xlu0 %436
        %438 = vrot.lane.b32.xlu0 %v379, 122
        %v439 = vpop.permute.xlu0 %438
        %v442 = vmul.f32 %v375, %v437
        %v443 = vmul.f32 %v376, %v439
        %v444 = vadd.f32 %v442, 0.0
        %v445 = vadd.f32 %v443, 0.0
        %446 = vrot.lane.b32.xlu0 %v378, 121
        %v447 = vpop.permute.xlu0 %446
        %448 = vrot.lane.b32.xlu0 %v379, 121
        %v449 = vpop.permute.xlu0 %448
        %v452 = vmul.f32 %v375, %v447
        %v453 = vmul.f32 %v376, %v449
        %v454 = vadd.f32 %v452, 0.0
        %v455 = vadd.f32 %v453, 0.0
        %456 = vrot.lane.b32.xlu0 %v378, 120
        %v457 = vpop.permute.xlu0 %456
        %458 = vrot.lane.b32.xlu0 %v379, 120
        %v459 = vpop.permute.xlu0 %458
        %v462 = vmul.f32 %v375, %v457
        %v463 = vmul.f32 %v376, %v459
        %v464 = vadd.f32 %v462, 0.0
        %v465 = vadd.f32 %v463, 0.0
        %466 = vrot.lane.b32.xlu0 %v378, 119
        %v467 = vpop.permute.xlu0 %466
        %468 = vrot.lane.b32.xlu0 %v379, 119
        %v469 = vpop.permute.xlu0 %468
        %v472 = vmul.f32 %v375, %v467
        %v473 = vmul.f32 %v376, %v469
        %v474 = vadd.f32 %v472, 0.0
        %v475 = vadd.f32 %v473, 0.0
        %476 = vrot.lane.b32.xlu0 %v378, 118
        %v477 = vpop.permute.xlu0 %476
        %478 = vrot.lane.b32.xlu0 %v379, 118
        %v479 = vpop.permute.xlu0 %478
        %v482 = vmul.f32 %v375, %v477
        %v483 = vmul.f32 %v376, %v479
        %v484 = vadd.f32 %v482, 0.0
        %v485 = vadd.f32 %v483, 0.0
        %486 = vrot.lane.b32.xlu0 %v378, 117
        %v487 = vpop.permute.xlu0 %486
        %488 = vrot.lane.b32.xlu0 %v379, 117
        %v489 = vpop.permute.xlu0 %488
        %v492 = vmul.f32 %v375, %v487
        %v493 = vmul.f32 %v376, %v489
        %v494 = vadd.f32 %v492, 0.0
        %v495 = vadd.f32 %v493, 0.0
        %496 = vrot.lane.b32.xlu0 %v378, 116
        %v497 = vpop.permute.xlu0 %496
        %498 = vrot.lane.b32.xlu0 %v379, 116
        %v499 = vpop.permute.xlu0 %498
        %v502 = vmul.f32 %v375, %v497
        %v503 = vmul.f32 %v376, %v499
        %v504 = vadd.f32 %v502, 0.0
        %v505 = vadd.f32 %v503, 0.0
        %506 = vrot.lane.b32.xlu0 %v378, 115
        %v507 = vpop.permute.xlu0 %506
        %508 = vrot.lane.b32.xlu0 %v379, 115
        %v509 = vpop.permute.xlu0 %508
        %v512 = vmul.f32 %v375, %v507
        %v513 = vmul.f32 %v376, %v509
        %v514 = vadd.f32 %v512, 0.0
        %v515 = vadd.f32 %v513, 0.0
        %516 = vrot.lane.b32.xlu0 %v378, 114
        %v517 = vpop.permute.xlu0 %516
        %518 = vrot.lane.b32.xlu0 %v379, 114
        %v519 = vpop.permute.xlu0 %518
        %v522 = vmul.f32 %v375, %v517
        %v523 = vmul.f32 %v376, %v519
        %v524 = vadd.f32 %v522, 0.0
        %v525 = vadd.f32 %v523, 0.0
        %526 = vrot.lane.b32.xlu0 %v378, 113
        %v527 = vpop.permute.xlu0 %526
        %528 = vrot.lane.b32.xlu0 %v379, 113
        %v529 = vpop.permute.xlu0 %528
        %v532 = vmul.f32 %v375, %v527
        %v533 = vmul.f32 %v376, %v529
        %v534 = vadd.f32 %v532, 0.0
        %v535 = vadd.f32 %v533, 0.0
        %536 = vrot.lane.b32.xlu0 %v378, 112
        %v537 = vpop.permute.xlu0 %536
        %538 = vrot.lane.b32.xlu0 %v379, 112
        %v539 = vpop.permute.xlu0 %538
        %v542 = vmul.f32 %v375, %v537
        %v543 = vmul.f32 %v376, %v539
        %v544 = vadd.f32 %v542, 0.0
        %v545 = vadd.f32 %v543, 0.0
        %s546 = scalar_lea.vmem %s310, 16
        %v547 = vld [vmem:[%s546] sm:$0xff]
        %v548 = vld [vmem:[%s546 + $0x8] sm:$0xff]
        %s549 = sadd.s32 %s371, 32
        %s550 = scalar_lea.vmem %s320, %s549
        %v551 = vld [vmem:[%s550] sm:$0xff]
        %v552 = vld [vmem:[%s550 + $0x8] sm:$0xff]
        %v553 = vmul.f32 %v547, %v551
        %v554 = vmul.f32 %v548, %v552
        %v555 = vadd.f32 %v382, %v553
        %v556 = vadd.f32 %v383, %v554
        %559 = vrot.lane.b32.xlu0 %v551, 127
        %v560 = vpop.permute.xlu0 %559
        %561 = vrot.lane.b32.xlu0 %v552, 127
        %v562 = vpop.permute.xlu0 %561
        %v565 = vmul.f32 %v547, %v560
        %v566 = vmul.f32 %v548, %v562
        %v567 = vadd.f32 %v394, %v565
        %v568 = vadd.f32 %v395, %v566
        %569 = vrot.lane.b32.xlu0 %v551, 126
        %v570 = vpop.permute.xlu0 %569
        %571 = vrot.lane.b32.xlu0 %v552, 126
        %v572 = vpop.permute.xlu0 %571
        %v575 = vmul.f32 %v547, %v570
        %v576 = vmul.f32 %v548, %v572
        %v577 = vadd.f32 %v404, %v575
        %v578 = vadd.f32 %v405, %v576
        %579 = vrot.lane.b32.xlu0 %v551, 125
        %v580 = vpop.permute.xlu0 %579
        %581 = vrot.lane.b32.xlu0 %v552, 125
        %v582 = vpop.permute.xlu0 %581
        %v585 = vmul.f32 %v547, %v580
        %v586 = vmul.f32 %v548, %v582
        %v587 = vadd.f32 %v414, %v585
        %v588 = vadd.f32 %v415, %v586
        %589 = vrot.lane.b32.xlu0 %v551, 124
        %v590 = vpop.permute.xlu0 %589
        %591 = vrot.lane.b32.xlu0 %v552, 124
        %v592 = vpop.permute.xlu0 %591
        %v595 = vmul.f32 %v547, %v590
        %v596 = vmul.f32 %v548, %v592
        %v597 = vadd.f32 %v424, %v595
        %v598 = vadd.f32 %v425, %v596
        %599 = vrot.lane.b32.xlu0 %v551, 123
        %v600 = vpop.permute.xlu0 %599
        %601 = vrot.lane.b32.xlu0 %v552, 123
        %v602 = vpop.permute.xlu0 %601
        %v605 = vmul.f32 %v547, %v600
        %v606 = vmul.f32 %v548, %v602
        %v607 = vadd.f32 %v434, %v605
        %v608 = vadd.f32 %v435, %v606
        %609 = vrot.lane.b32.xlu0 %v551, 122
        %v610 = vpop.permute.xlu0 %609
        %611 = vrot.lane.b32.xlu0 %v552, 122
        %v612 = vpop.permute.xlu0 %611
        %v615 = vmul.f32 %v547, %v610
        %v616 = vmul.f32 %v548, %v612
        %v617 = vadd.f32 %v444, %v615
        %v618 = vadd.f32 %v445, %v616
        %619 = vrot.lane.b32.xlu0 %v551, 121
        %v620 = vpop.permute.xlu0 %619
        %621 = vrot.lane.b32.xlu0 %v552, 121
        %v622 = vpop.permute.xlu0 %621
        %v625 = vmul.f32 %v547, %v620
        %v626 = vmul.f32 %v548, %v622
        %v627 = vadd.f32 %v454, %v625
        %v628 = vadd.f32 %v455, %v626
        %629 = vrot.lane.b32.xlu0 %v551, 120
        %v630 = vpop.permute.xlu0 %629
        %631 = vrot.lane.b32.xlu0 %v552, 120
        %v632 = vpop.permute.xlu0 %631
        %v635 = vmul.f32 %v547, %v630
        %v636 = vmul.f32 %v548, %v632
        %v637 = vadd.f32 %v464, %v635
        %v638 = vadd.f32 %v465, %v636
        %639 = vrot.lane.b32.xlu0 %v551, 119
        %v640 = vpop.permute.xlu0 %639
        %641 = vrot.lane.b32.xlu0 %v552, 119
        %v642 = vpop.permute.xlu0 %641
        %v645 = vmul.f32 %v547, %v640
        %v646 = vmul.f32 %v548, %v642
        %v647 = vadd.f32 %v474, %v645
        %v648 = vadd.f32 %v475, %v646
        %649 = vrot.lane.b32.xlu0 %v551, 118
        %v650 = vpop.permute.xlu0 %649
        %651 = vrot.lane.b32.xlu0 %v552, 118
        %v652 = vpop.permute.xlu0 %651
        %v655 = vmul.f32 %v547, %v650
        %v656 = vmul.f32 %v548, %v652
        %v657 = vadd.f32 %v484, %v655
        %v658 = vadd.f32 %v485, %v656
        %659 = vrot.lane.b32.xlu0 %v551, 117
        %v660 = vpop.permute.xlu0 %659
        %661 = vrot.lane.b32.xlu0 %v552, 117
        %v662 = vpop.permute.xlu0 %661
        %v665 = vmul.f32 %v547, %v660
        %v666 = vmul.f32 %v548, %v662
        %v667 = vadd.f32 %v494, %v665
        %v668 = vadd.f32 %v495, %v666
        %669 = vrot.lane.b32.xlu0 %v551, 116
        %v670 = vpop.permute.xlu0 %669
        %671 = vrot.lane.b32.xlu0 %v552, 116
        %v672 = vpop.permute.xlu0 %671
        %v675 = vmul.f32 %v547, %v670
        %v676 = vmul.f32 %v548, %v672
        %v677 = vadd.f32 %v504, %v675
        %v678 = vadd.f32 %v505, %v676
        %679 = vrot.lane.b32.xlu0 %v551, 115
        %v680 = vpop.permute.xlu0 %679
        %681 = vrot.lane.b32.xlu0 %v552, 115
        %v682 = vpop.permute.xlu0 %681
        %v685 = vmul.f32 %v547, %v680
        %v686 = vmul.f32 %v548, %v682
        %v687 = vadd.f32 %v514, %v685
        %v688 = vadd.f32 %v515, %v686
        %689 = vrot.lane.b32.xlu0 %v551, 114
        %v690 = vpop.permute.xlu0 %689
        %691 = vrot.lane.b32.xlu0 %v552, 114
        %v692 = vpop.permute.xlu0 %691
        %v695 = vmul.f32 %v547, %v690
        %v696 = vmul.f32 %v548, %v692
        %v697 = vadd.f32 %v524, %v695
        %v698 = vadd.f32 %v525, %v696
        %699 = vrot.lane.b32.xlu0 %v551, 113
        %v700 = vpop.permute.xlu0 %699
        %701 = vrot.lane.b32.xlu0 %v552, 113
        %v702 = vpop.permute.xlu0 %701
        %v705 = vmul.f32 %v547, %v700
        %v706 = vmul.f32 %v548, %v702
        %v707 = vadd.f32 %v534, %v705
        %v708 = vadd.f32 %v535, %v706
        %709 = vrot.lane.b32.xlu0 %v551, 112
        %v710 = vpop.permute.xlu0 %709
        %711 = vrot.lane.b32.xlu0 %v552, 112
        %v712 = vpop.permute.xlu0 %711
        %v715 = vmul.f32 %v547, %v710
        %v716 = vmul.f32 %v548, %v712
        %v717 = vadd.f32 %v544, %v715
        %v718 = vadd.f32 %v545, %v716
        %s719 = scalar_lea.vmem %s310, 32
        %v720 = vld [vmem:[%s719] sm:$0xff]
        %v721 = vld [vmem:[%s719 + $0x8] sm:$0xff]
        %s722 = sadd.s32 %s371, 64
        %s723 = scalar_lea.vmem %s320, %s722
        %v724 = vld [vmem:[%s723] sm:$0xff]
        %v725 = vld [vmem:[%s723 + $0x8] sm:$0xff]
        %v726 = vmul.f32 %v720, %v724
        %v727 = vmul.f32 %v721, %v725
        %v728 = vadd.f32 %v555, %v726
        %v729 = vadd.f32 %v556, %v727
        %732 = vrot.lane.b32.xlu0 %v724, 127
        %v733 = vpop.permute.xlu0 %732
        %734 = vrot.lane.b32.xlu0 %v725, 127
        %v735 = vpop.permute.xlu0 %734
        %v738 = vmul.f32 %v720, %v733
        %v739 = vmul.f32 %v721, %v735
        %v740 = vadd.f32 %v567, %v738
        %v741 = vadd.f32 %v568, %v739
        %742 = vrot.lane.b32.xlu0 %v724, 126
        %v743 = vpop.permute.xlu0 %742
        %744 = vrot.lane.b32.xlu0 %v725, 126
        %v745 = vpop.permute.xlu0 %744
        %v748 = vmul.f32 %v720, %v743
        %v749 = vmul.f32 %v721, %v745
        %v750 = vadd.f32 %v577, %v748
        %v751 = vadd.f32 %v578, %v749
        %752 = vrot.lane.b32.xlu0 %v724, 125
        %v753 = vpop.permute.xlu0 %752
        %754 = vrot.lane.b32.xlu0 %v725, 125
        %v755 = vpop.permute.xlu0 %754
        %v758 = vmul.f32 %v720, %v753
        %v759 = vmul.f32 %v721, %v755
        %v760 = vadd.f32 %v587, %v758
        %v761 = vadd.f32 %v588, %v759
        %762 = vrot.lane.b32.xlu0 %v724, 124
        %v763 = vpop.permute.xlu0 %762
        %764 = vrot.lane.b32.xlu0 %v725, 124
        %v765 = vpop.permute.xlu0 %764
        %v768 = vmul.f32 %v720, %v763
        %v769 = vmul.f32 %v721, %v765
        %v770 = vadd.f32 %v597, %v768
        %v771 = vadd.f32 %v598, %v769
        %772 = vrot.lane.b32.xlu0 %v724, 123
        %v773 = vpop.permute.xlu0 %772
        %774 = vrot.lane.b32.xlu0 %v725, 123
        %v775 = vpop.permute.xlu0 %774
        %v778 = vmul.f32 %v720, %v773
        %v779 = vmul.f32 %v721, %v775
        %v780 = vadd.f32 %v607, %v778
        %v781 = vadd.f32 %v608, %v779
        %782 = vrot.lane.b32.xlu0 %v724, 122
        %v783 = vpop.permute.xlu0 %782
        %784 = vrot.lane.b32.xlu0 %v725, 122
        %v785 = vpop.permute.xlu0 %784
        %v788 = vmul.f32 %v720, %v783
        %v789 = vmul.f32 %v721, %v785
        %v790 = vadd.f32 %v617, %v788
        %v791 = vadd.f32 %v618, %v789
        %792 = vrot.lane.b32.xlu0 %v724, 121
        %v793 = vpop.permute.xlu0 %792
        %794 = vrot.lane.b32.xlu0 %v725, 121
        %v795 = vpop.permute.xlu0 %794
        %v798 = vmul.f32 %v720, %v793
        %v799 = vmul.f32 %v721, %v795
        %v800 = vadd.f32 %v627, %v798
        %v801 = vadd.f32 %v628, %v799
        %802 = vrot.lane.b32.xlu0 %v724, 120
        %v803 = vpop.permute.xlu0 %802
        %804 = vrot.lane.b32.xlu0 %v725, 120
        %v805 = vpop.permute.xlu0 %804
        %v808 = vmul.f32 %v720, %v803
        %v809 = vmul.f32 %v721, %v805
        %v810 = vadd.f32 %v637, %v808
        %v811 = vadd.f32 %v638, %v809
        %812 = vrot.lane.b32.xlu0 %v724, 119
        %v813 = vpop.permute.xlu0 %812
        %814 = vrot.lane.b32.xlu0 %v725, 119
        %v815 = vpop.permute.xlu0 %814
        %v818 = vmul.f32 %v720, %v813
        %v819 = vmul.f32 %v721, %v815
        %v820 = vadd.f32 %v647, %v818
        %v821 = vadd.f32 %v648, %v819
        %822 = vrot.lane.b32.xlu0 %v724, 118
        %v823 = vpop.permute.xlu0 %822
        %824 = vrot.lane.b32.xlu0 %v725, 118
        %v825 = vpop.permute.xlu0 %824
        %v828 = vmul.f32 %v720, %v823
        %v829 = vmul.f32 %v721, %v825
        %v830 = vadd.f32 %v657, %v828
        %v831 = vadd.f32 %v658, %v829
        %832 = vrot.lane.b32.xlu0 %v724, 117
        %v833 = vpop.permute.xlu0 %832
        %834 = vrot.lane.b32.xlu0 %v725, 117
        %v835 = vpop.permute.xlu0 %834
        %v838 = vmul.f32 %v720, %v833
        %v839 = vmul.f32 %v721, %v835
        %v840 = vadd.f32 %v667, %v838
        %v841 = vadd.f32 %v668, %v839
        %842 = vrot.lane.b32.xlu0 %v724, 116
        %v843 = vpop.permute.xlu0 %842
        %844 = vrot.lane.b32.xlu0 %v725, 116
        %v845 = vpop.permute.xlu0 %844
        %v848 = vmul.f32 %v720, %v843
        %v849 = vmul.f32 %v721, %v845
        %v850 = vadd.f32 %v677, %v848
        %v851 = vadd.f32 %v678, %v849
        %852 = vrot.lane.b32.xlu0 %v724, 115
        %v853 = vpop.permute.xlu0 %852
        %854 = vrot.lane.b32.xlu0 %v725, 115
        %v855 = vpop.permute.xlu0 %854
        %v858 = vmul.f32 %v720, %v853
        %v859 = vmul.f32 %v721, %v855
        %v860 = vadd.f32 %v687, %v858
        %v861 = vadd.f32 %v688, %v859
        %862 = vrot.lane.b32.xlu0 %v724, 114
        %v863 = vpop.permute.xlu0 %862
        %864 = vrot.lane.b32.xlu0 %v725, 114
        %v865 = vpop.permute.xlu0 %864
        %v868 = vmul.f32 %v720, %v863
        %v869 = vmul.f32 %v721, %v865
        %v870 = vadd.f32 %v697, %v868
        %v871 = vadd.f32 %v698, %v869
        %872 = vrot.lane.b32.xlu0 %v724, 113
        %v873 = vpop.permute.xlu0 %872
        %874 = vrot.lane.b32.xlu0 %v725, 113
        %v875 = vpop.permute.xlu0 %874
        %v878 = vmul.f32 %v720, %v873
        %v879 = vmul.f32 %v721, %v875
        %v880 = vadd.f32 %v707, %v878
        %v881 = vadd.f32 %v708, %v879
        %882 = vrot.lane.b32.xlu0 %v724, 112
        %v883 = vpop.permute.xlu0 %882
        %884 = vrot.lane.b32.xlu0 %v725, 112
        %v885 = vpop.permute.xlu0 %884
        %v888 = vmul.f32 %v720, %v883
        %v889 = vmul.f32 %v721, %v885
        %v890 = vadd.f32 %v717, %v888
        %v891 = vadd.f32 %v718, %v889
        %s892 = scalar_lea.vmem %s310, 48
        %v893 = vld [vmem:[%s892] sm:$0xff]
        %v894 = vld [vmem:[%s892 + $0x8] sm:$0xff]
        %s895 = sadd.s32 %s371, 96
        %s896 = scalar_lea.vmem %s320, %s895
        %v897 = vld [vmem:[%s896] sm:$0xff]
        %v898 = vld [vmem:[%s896 + $0x8] sm:$0xff]
        %v899 = vmul.f32 %v893, %v897
        %v900 = vmul.f32 %v894, %v898
        %v901 = vadd.f32 %v728, %v899
        %v902 = vadd.f32 %v729, %v900
        %905 = vrot.lane.b32.xlu0 %v897, 127
        %v906 = vpop.permute.xlu0 %905
        %907 = vrot.lane.b32.xlu0 %v898, 127
        %v908 = vpop.permute.xlu0 %907
        %v911 = vmul.f32 %v893, %v906
        %v912 = vmul.f32 %v894, %v908
        %v913 = vadd.f32 %v740, %v911
        %v914 = vadd.f32 %v741, %v912
        %915 = vrot.lane.b32.xlu0 %v897, 126
        %v916 = vpop.permute.xlu0 %915
        %917 = vrot.lane.b32.xlu0 %v898, 126
        %v918 = vpop.permute.xlu0 %917
        %v921 = vmul.f32 %v893, %v916
        %v922 = vmul.f32 %v894, %v918
        %v923 = vadd.f32 %v750, %v921
        %v924 = vadd.f32 %v751, %v922
        %925 = vrot.lane.b32.xlu0 %v897, 125
        %v926 = vpop.permute.xlu0 %925
        %927 = vrot.lane.b32.xlu0 %v898, 125
        %v928 = vpop.permute.xlu0 %927
        %v931 = vmul.f32 %v893, %v926
        %v932 = vmul.f32 %v894, %v928
        %v933 = vadd.f32 %v760, %v931
        %v934 = vadd.f32 %v761, %v932
        %935 = vrot.lane.b32.xlu0 %v897, 124
        %v936 = vpop.permute.xlu0 %935
        %937 = vrot.lane.b32.xlu0 %v898, 124
        %v938 = vpop.permute.xlu0 %937
        %v941 = vmul.f32 %v893, %v936
        %v942 = vmul.f32 %v894, %v938
        %v943 = vadd.f32 %v770, %v941
        %v944 = vadd.f32 %v771, %v942
        %945 = vrot.lane.b32.xlu0 %v897, 123
        %v946 = vpop.permute.xlu0 %945
        %947 = vrot.lane.b32.xlu0 %v898, 123
        %v948 = vpop.permute.xlu0 %947
        %v951 = vmul.f32 %v893, %v946
        %v952 = vmul.f32 %v894, %v948
        %v953 = vadd.f32 %v780, %v951
        %v954 = vadd.f32 %v781, %v952
        %955 = vrot.lane.b32.xlu0 %v897, 122
        %v956 = vpop.permute.xlu0 %955
        %957 = vrot.lane.b32.xlu0 %v898, 122
        %v958 = vpop.permute.xlu0 %957
        %v961 = vmul.f32 %v893, %v956
        %v962 = vmul.f32 %v894, %v958
        %v963 = vadd.f32 %v790, %v961
        %v964 = vadd.f32 %v791, %v962
        %965 = vrot.lane.b32.xlu0 %v897, 121
        %v966 = vpop.permute.xlu0 %965
        %967 = vrot.lane.b32.xlu0 %v898, 121
        %v968 = vpop.permute.xlu0 %967
        %v971 = vmul.f32 %v893, %v966
        %v972 = vmul.f32 %v894, %v968
        %v973 = vadd.f32 %v800, %v971
        %v974 = vadd.f32 %v801, %v972
        %975 = vrot.lane.b32.xlu0 %v897, 120
        %v976 = vpop.permute.xlu0 %975
        %977 = vrot.lane.b32.xlu0 %v898, 120
        %v978 = vpop.permute.xlu0 %977
        %v981 = vmul.f32 %v893, %v976
        %v982 = vmul.f32 %v894, %v978
        %v983 = vadd.f32 %v810, %v981
        %v984 = vadd.f32 %v811, %v982
        %985 = vrot.lane.b32.xlu0 %v897, 119
        %v986 = vpop.permute.xlu0 %985
        %987 = vrot.lane.b32.xlu0 %v898, 119
        %v988 = vpop.permute.xlu0 %987
        %v991 = vmul.f32 %v893, %v986
        %v992 = vmul.f32 %v894, %v988
        %v993 = vadd.f32 %v820, %v991
        %v994 = vadd.f32 %v821, %v992
        %995 = vrot.lane.b32.xlu0 %v897, 118
        %v996 = vpop.permute.xlu0 %995
        %997 = vrot.lane.b32.xlu0 %v898, 118
        %v998 = vpop.permute.xlu0 %997
        %v1001 = vmul.f32 %v893, %v996
        %v1002 = vmul.f32 %v894, %v998
        %v1003 = vadd.f32 %v830, %v1001
        %v1004 = vadd.f32 %v831, %v1002
        %1005 = vrot.lane.b32.xlu0 %v897, 117
        %v1006 = vpop.permute.xlu0 %1005
        %1007 = vrot.lane.b32.xlu0 %v898, 117
        %v1008 = vpop.permute.xlu0 %1007
        %v1011 = vmul.f32 %v893, %v1006
        %v1012 = vmul.f32 %v894, %v1008
        %v1013 = vadd.f32 %v840, %v1011
        %v1014 = vadd.f32 %v841, %v1012
        %1015 = vrot.lane.b32.xlu0 %v897, 116
        %v1016 = vpop.permute.xlu0 %1015
        %1017 = vrot.lane.b32.xlu0 %v898, 116
        %v1018 = vpop.permute.xlu0 %1017
        %v1021 = vmul.f32 %v893, %v1016
        %v1022 = vmul.f32 %v894, %v1018
        %v1023 = vadd.f32 %v850, %v1021
        %v1024 = vadd.f32 %v851, %v1022
        %1025 = vrot.lane.b32.xlu0 %v897, 115
        %v1026 = vpop.permute.xlu0 %1025
        %1027 = vrot.lane.b32.xlu0 %v898, 115
        %v1028 = vpop.permute.xlu0 %1027
        %v1031 = vmul.f32 %v893, %v1026
        %v1032 = vmul.f32 %v894, %v1028
        %v1033 = vadd.f32 %v860, %v1031
        %v1034 = vadd.f32 %v861, %v1032
        %1035 = vrot.lane.b32.xlu0 %v897, 114
        %v1036 = vpop.permute.xlu0 %1035
        %1037 = vrot.lane.b32.xlu0 %v898, 114
        %v1038 = vpop.permute.xlu0 %1037
        %v1041 = vmul.f32 %v893, %v1036
        %v1042 = vmul.f32 %v894, %v1038
        %v1043 = vadd.f32 %v870, %v1041
        %v1044 = vadd.f32 %v871, %v1042
        %1045 = vrot.lane.b32.xlu0 %v897, 113
        %v1046 = vpop.permute.xlu0 %1045
        %1047 = vrot.lane.b32.xlu0 %v898, 113
        %v1048 = vpop.permute.xlu0 %1047
        %v1051 = vmul.f32 %v893, %v1046
        %v1052 = vmul.f32 %v894, %v1048
        %v1053 = vadd.f32 %v880, %v1051
        %v1054 = vadd.f32 %v881, %v1052
        %1055 = vrot.lane.b32.xlu0 %v897, 112
        %v1056 = vpop.permute.xlu0 %1055
        %1057 = vrot.lane.b32.xlu0 %v898, 112
        %v1058 = vpop.permute.xlu0 %1057
        %v1061 = vmul.f32 %v893, %v1056
        %v1062 = vmul.f32 %v894, %v1058
        %v1063 = vadd.f32 %v890, %v1061
        %v1064 = vadd.f32 %v891, %v1062
        %v1065 = vmul.f32 %v901, %v373
        %v1066 = vmul.f32 %v902, %v374
        %s1067 = smul.u32 %s364, 17
        %s1068 = smul.u32 %s1067, 16
        %s1069 = scalar_lea.vmem %s343, %s1068
        %vm1070 = vcmask 130048
        %1071 = vst.msk [vmem:[%s1069] sm:$0xff] %vm1070, %v1065
        %1072 = vst.msk [vmem:[%s1069 + $0x8] sm:$0xff] %vm1070, %v1066
        %v1073 = vsub.f32 %v901, %v1065
        %v1074 = vsub.f32 %v902, %v1066
        %s1075 = scalar_lea.vmem %s359, %s1068
        %1076 = vst.msk [vmem:[%s1075] sm:$0xff] %vm1070, %v1073
        %1077 = vst.msk [vmem:[%s1075 + $0x8] sm:$0xff] %vm1070, %v1074
        %1080 = vrot.lane.b32.xlu0 %v373, 127
        %v1081 = vpop.permute.xlu0 %1080
        %1082 = vrot.lane.b32.xlu0 %v374, 127
        %v1083 = vpop.permute.xlu0 %1082
        %v1086 = vmul.f32 %v913, %v1081
        %v1087 = vmul.f32 %v914, %v1083
        %s1088 = sadd.s32 %s1067, 1
        %s1089 = smul.u32 %s1088, 16
        %s1090 = scalar_lea.vmem %s343, %s1089
        %1091 = vst.msk [vmem:[%s1090] sm:$0xff] %vm1070, %v1086
        %1092 = vst.msk [vmem:[%s1090 + $0x8] sm:$0xff] %vm1070, %v1087
        %v1093 = vsub.f32 %v913, %v1086
        %v1094 = vsub.f32 %v914, %v1087
        %s1095 = scalar_lea.vmem %s359, %s1089
        %1096 = vst.msk [vmem:[%s1095] sm:$0xff] %vm1070, %v1093
        %1097 = vst.msk [vmem:[%s1095 + $0x8] sm:$0xff] %vm1070, %v1094
        %1098 = vrot.lane.b32.xlu0 %v373, 126
        %v1099 = vpop.permute.xlu0 %1098
        %1100 = vrot.lane.b32.xlu0 %v374, 126
        %v1101 = vpop.permute.xlu0 %1100
        %v1104 = vmul.f32 %v923, %v1099
        %v1105 = vmul.f32 %v924, %v1101
        %s1106 = sadd.s32 %s1067, 2
        %s1107 = smul.u32 %s1106, 16
        %s1108 = scalar_lea.vmem %s343, %s1107
        %1109 = vst.msk [vmem:[%s1108] sm:$0xff] %vm1070, %v1104
        %1110 = vst.msk [vmem:[%s1108 + $0x8] sm:$0xff] %vm1070, %v1105
        %v1111 = vsub.f32 %v923, %v1104
        %v1112 = vsub.f32 %v924, %v1105
        %s1113 = scalar_lea.vmem %s359, %s1107
        %1114 = vst.msk [vmem:[%s1113] sm:$0xff] %vm1070, %v1111
        %1115 = vst.msk [vmem:[%s1113 + $0x8] sm:$0xff] %vm1070, %v1112
        %1116 = vrot.lane.b32.xlu0 %v373, 125
        %v1117 = vpop.permute.xlu0 %1116
        %1118 = vrot.lane.b32.xlu0 %v374, 125
        %v1119 = vpop.permute.xlu0 %1118
        %v1122 = vmul.f32 %v933, %v1117
        %v1123 = vmul.f32 %v934, %v1119
        %s1124 = sadd.s32 %s1067, 3
        %s1125 = smul.u32 %s1124, 16
        %s1126 = scalar_lea.vmem %s343, %s1125
        %1127 = vst.msk [vmem:[%s1126] sm:$0xff] %vm1070, %v1122
        %1128 = vst.msk [vmem:[%s1126 + $0x8] sm:$0xff] %vm1070, %v1123
        %v1129 = vsub.f32 %v933, %v1122
        %v1130 = vsub.f32 %v934, %v1123
        %s1131 = scalar_lea.vmem %s359, %s1125
        %1132 = vst.msk [vmem:[%s1131] sm:$0xff] %vm1070, %v1129
        %1133 = vst.msk [vmem:[%s1131 + $0x8] sm:$0xff] %vm1070, %v1130
        %1134 = vrot.lane.b32.xlu0 %v373, 124
        %v1135 = vpop.permute.xlu0 %1134
        %1136 = vrot.lane.b32.xlu0 %v374, 124
        %v1137 = vpop.permute.xlu0 %1136
        %v1140 = vmul.f32 %v943, %v1135
        %v1141 = vmul.f32 %v944, %v1137
        %s1142 = sadd.s32 %s1067, 4
        %s1143 = smul.u32 %s1142, 16
        %s1144 = scalar_lea.vmem %s343, %s1143
        %1145 = vst.msk [vmem:[%s1144] sm:$0xff] %vm1070, %v1140
        %1146 = vst.msk [vmem:[%s1144 + $0x8] sm:$0xff] %vm1070, %v1141
        %v1147 = vsub.f32 %v943, %v1140
        %v1148 = vsub.f32 %v944, %v1141
        %s1149 = scalar_lea.vmem %s359, %s1143
        %1150 = vst.msk [vmem:[%s1149] sm:$0xff] %vm1070, %v1147
        %1151 = vst.msk [vmem:[%s1149 + $0x8] sm:$0xff] %vm1070, %v1148
        %1152 = vrot.lane.b32.xlu0 %v373, 123
        %v1153 = vpop.permute.xlu0 %1152
        %1154 = vrot.lane.b32.xlu0 %v374, 123
        %v1155 = vpop.permute.xlu0 %1154
        %v1158 = vmul.f32 %v953, %v1153
        %v1159 = vmul.f32 %v954, %v1155
        %s1160 = sadd.s32 %s1067, 5
        %s1161 = smul.u32 %s1160, 16
        %s1162 = scalar_lea.vmem %s343, %s1161
        %1163 = vst.msk [vmem:[%s1162] sm:$0xff] %vm1070, %v1158
        %1164 = vst.msk [vmem:[%s1162 + $0x8] sm:$0xff] %vm1070, %v1159
        %v1165 = vsub.f32 %v953, %v1158
        %v1166 = vsub.f32 %v954, %v1159
        %s1167 = scalar_lea.vmem %s359, %s1161
        %1168 = vst.msk [vmem:[%s1167] sm:$0xff] %vm1070, %v1165
        %1169 = vst.msk [vmem:[%s1167 + $0x8] sm:$0xff] %vm1070, %v1166
        %1170 = vrot.lane.b32.xlu0 %v373, 122
        %v1171 = vpop.permute.xlu0 %1170
        %1172 = vrot.lane.b32.xlu0 %v374, 122
        %v1173 = vpop.permute.xlu0 %1172
        %v1176 = vmul.f32 %v963, %v1171
        %v1177 = vmul.f32 %v964, %v1173
        %s1178 = sadd.s32 %s1067, 6
        %s1179 = smul.u32 %s1178, 16
        %s1180 = scalar_lea.vmem %s343, %s1179
        %1181 = vst.msk [vmem:[%s1180] sm:$0xff] %vm1070, %v1176
        %1182 = vst.msk [vmem:[%s1180 + $0x8] sm:$0xff] %vm1070, %v1177
        %v1183 = vsub.f32 %v963, %v1176
        %v1184 = vsub.f32 %v964, %v1177
        %s1185 = scalar_lea.vmem %s359, %s1179
        %1186 = vst.msk [vmem:[%s1185] sm:$0xff] %vm1070, %v1183
        %1187 = vst.msk [vmem:[%s1185 + $0x8] sm:$0xff] %vm1070, %v1184
        %1188 = vrot.lane.b32.xlu0 %v373, 121
        %v1189 = vpop.permute.xlu0 %1188
        %1190 = vrot.lane.b32.xlu0 %v374, 121
        %v1191 = vpop.permute.xlu0 %1190
        %v1194 = vmul.f32 %v973, %v1189
        %v1195 = vmul.f32 %v974, %v1191
        %s1196 = sadd.s32 %s1067, 7
        %s1197 = smul.u32 %s1196, 16
        %s1198 = scalar_lea.vmem %s343, %s1197
        %1199 = vst.msk [vmem:[%s1198] sm:$0xff] %vm1070, %v1194
        %1200 = vst.msk [vmem:[%s1198 + $0x8] sm:$0xff] %vm1070, %v1195
        %v1201 = vsub.f32 %v973, %v1194
        %v1202 = vsub.f32 %v974, %v1195
        %s1203 = scalar_lea.vmem %s359, %s1197
        %1204 = vst.msk [vmem:[%s1203] sm:$0xff] %vm1070, %v1201
        %1205 = vst.msk [vmem:[%s1203 + $0x8] sm:$0xff] %vm1070, %v1202
        %1206 = vrot.lane.b32.xlu0 %v373, 120
        %v1207 = vpop.permute.xlu0 %1206
        %1208 = vrot.lane.b32.xlu0 %v374, 120
        %v1209 = vpop.permute.xlu0 %1208
        %v1212 = vmul.f32 %v983, %v1207
        %v1213 = vmul.f32 %v984, %v1209
        %s1214 = sadd.s32 %s1067, 8
        %s1215 = smul.u32 %s1214, 16
        %s1216 = scalar_lea.vmem %s343, %s1215
        %1217 = vst.msk [vmem:[%s1216] sm:$0xff] %vm1070, %v1212
        %1218 = vst.msk [vmem:[%s1216 + $0x8] sm:$0xff] %vm1070, %v1213
        %v1219 = vsub.f32 %v983, %v1212
        %v1220 = vsub.f32 %v984, %v1213
        %s1221 = scalar_lea.vmem %s359, %s1215
        %1222 = vst.msk [vmem:[%s1221] sm:$0xff] %vm1070, %v1219
        %1223 = vst.msk [vmem:[%s1221 + $0x8] sm:$0xff] %vm1070, %v1220
        %1224 = vrot.lane.b32.xlu0 %v373, 119
        %v1225 = vpop.permute.xlu0 %1224
        %1226 = vrot.lane.b32.xlu0 %v374, 119
        %v1227 = vpop.permute.xlu0 %1226
        %v1230 = vmul.f32 %v993, %v1225
        %v1231 = vmul.f32 %v994, %v1227
        %s1232 = sadd.s32 %s1067, 9
        %s1233 = smul.u32 %s1232, 16
        %s1234 = scalar_lea.vmem %s343, %s1233
        %1235 = vst.msk [vmem:[%s1234] sm:$0xff] %vm1070, %v1230
        %1236 = vst.msk [vmem:[%s1234 + $0x8] sm:$0xff] %vm1070, %v1231
        %v1237 = vsub.f32 %v993, %v1230
        %v1238 = vsub.f32 %v994, %v1231
        %s1239 = scalar_lea.vmem %s359, %s1233
        %1240 = vst.msk [vmem:[%s1239] sm:$0xff] %vm1070, %v1237
        %1241 = vst.msk [vmem:[%s1239 + $0x8] sm:$0xff] %vm1070, %v1238
        %1242 = vrot.lane.b32.xlu0 %v373, 118
        %v1243 = vpop.permute.xlu0 %1242
        %1244 = vrot.lane.b32.xlu0 %v374, 118
        %v1245 = vpop.permute.xlu0 %1244
        %v1248 = vmul.f32 %v1003, %v1243
        %v1249 = vmul.f32 %v1004, %v1245
        %s1250 = sadd.s32 %s1067, 10
        %s1251 = smul.u32 %s1250, 16
        %s1252 = scalar_lea.vmem %s343, %s1251
        %1253 = vst.msk [vmem:[%s1252] sm:$0xff] %vm1070, %v1248
        %1254 = vst.msk [vmem:[%s1252 + $0x8] sm:$0xff] %vm1070, %v1249
        %v1255 = vsub.f32 %v1003, %v1248
        %v1256 = vsub.f32 %v1004, %v1249
        %s1257 = scalar_lea.vmem %s359, %s1251
        %1258 = vst.msk [vmem:[%s1257] sm:$0xff] %vm1070, %v1255
        %1259 = vst.msk [vmem:[%s1257 + $0x8] sm:$0xff] %vm1070, %v1256
        %1260 = vrot.lane.b32.xlu0 %v373, 117
        %v1261 = vpop.permute.xlu0 %1260
        %1262 = vrot.lane.b32.xlu0 %v374, 117
        %v1263 = vpop.permute.xlu0 %1262
        %v1266 = vmul.f32 %v1013, %v1261
        %v1267 = vmul.f32 %v1014, %v1263
        %s1268 = sadd.s32 %s1067, 11
        %s1269 = smul.u32 %s1268, 16
        %s1270 = scalar_lea.vmem %s343, %s1269
        %1271 = vst.msk [vmem:[%s1270] sm:$0xff] %vm1070, %v1266
        %1272 = vst.msk [vmem:[%s1270 + $0x8] sm:$0xff] %vm1070, %v1267
        %v1273 = vsub.f32 %v1013, %v1266
        %v1274 = vsub.f32 %v1014, %v1267
        %s1275 = scalar_lea.vmem %s359, %s1269
        %1276 = vst.msk [vmem:[%s1275] sm:$0xff] %vm1070, %v1273
        %1277 = vst.msk [vmem:[%s1275 + $0x8] sm:$0xff] %vm1070, %v1274
        %1278 = vrot.lane.b32.xlu0 %v373, 116
        %v1279 = vpop.permute.xlu0 %1278
        %1280 = vrot.lane.b32.xlu0 %v374, 116
        %v1281 = vpop.permute.xlu0 %1280
        %v1284 = vmul.f32 %v1023, %v1279
        %v1285 = vmul.f32 %v1024, %v1281
        %s1286 = sadd.s32 %s1067, 12
        %s1287 = smul.u32 %s1286, 16
        %s1288 = scalar_lea.vmem %s343, %s1287
        %1289 = vst.msk [vmem:[%s1288] sm:$0xff] %vm1070, %v1284
        %1290 = vst.msk [vmem:[%s1288 + $0x8] sm:$0xff] %vm1070, %v1285
        %v1291 = vsub.f32 %v1023, %v1284
        %v1292 = vsub.f32 %v1024, %v1285
        %s1293 = scalar_lea.vmem %s359, %s1287
        %1294 = vst.msk [vmem:[%s1293] sm:$0xff] %vm1070, %v1291
        %1295 = vst.msk [vmem:[%s1293 + $0x8] sm:$0xff] %vm1070, %v1292
        %1296 = vrot.lane.b32.xlu0 %v373, 115
        %v1297 = vpop.permute.xlu0 %1296
        %1298 = vrot.lane.b32.xlu0 %v374, 115
        %v1299 = vpop.permute.xlu0 %1298
        %v1302 = vmul.f32 %v1033, %v1297
        %v1303 = vmul.f32 %v1034, %v1299
        %s1304 = sadd.s32 %s1067, 13
        %s1305 = smul.u32 %s1304, 16
        %s1306 = scalar_lea.vmem %s343, %s1305
        %1307 = vst.msk [vmem:[%s1306] sm:$0xff] %vm1070, %v1302
        %1308 = vst.msk [vmem:[%s1306 + $0x8] sm:$0xff] %vm1070, %v1303
        %v1309 = vsub.f32 %v1033, %v1302
        %v1310 = vsub.f32 %v1034, %v1303
        %s1311 = scalar_lea.vmem %s359, %s1305
        %1312 = vst.msk [vmem:[%s1311] sm:$0xff] %vm1070, %v1309
        %1313 = vst.msk [vmem:[%s1311 + $0x8] sm:$0xff] %vm1070, %v1310
        %1314 = vrot.lane.b32.xlu0 %v373, 114
        %v1315 = vpop.permute.xlu0 %1314
        %1316 = vrot.lane.b32.xlu0 %v374, 114
        %v1317 = vpop.permute.xlu0 %1316
        %v1320 = vmul.f32 %v1043, %v1315
        %v1321 = vmul.f32 %v1044, %v1317
        %s1322 = sadd.s32 %s1067, 14
        %s1323 = smul.u32 %s1322, 16
        %s1324 = scalar_lea.vmem %s343, %s1323
        %1325 = vst.msk [vmem:[%s1324] sm:$0xff] %vm1070, %v1320
        %1326 = vst.msk [vmem:[%s1324 + $0x8] sm:$0xff] %vm1070, %v1321
        %v1327 = vsub.f32 %v1043, %v1320
        %v1328 = vsub.f32 %v1044, %v1321
        %s1329 = scalar_lea.vmem %s359, %s1323
        %1330 = vst.msk [vmem:[%s1329] sm:$0xff] %vm1070, %v1327
        %1331 = vst.msk [vmem:[%s1329 + $0x8] sm:$0xff] %vm1070, %v1328
        %1332 = vrot.lane.b32.xlu0 %v373, 113
        %v1333 = vpop.permute.xlu0 %1332
        %1334 = vrot.lane.b32.xlu0 %v374, 113
        %v1335 = vpop.permute.xlu0 %1334
        %v1338 = vmul.f32 %v1053, %v1333
        %v1339 = vmul.f32 %v1054, %v1335
        %s1340 = sadd.s32 %s1067, 15
        %s1341 = smul.u32 %s1340, 16
        %s1342 = scalar_lea.vmem %s343, %s1341
        %1343 = vst.msk [vmem:[%s1342] sm:$0xff] %vm1070, %v1338
        %1344 = vst.msk [vmem:[%s1342 + $0x8] sm:$0xff] %vm1070, %v1339
        %v1345 = vsub.f32 %v1053, %v1338
        %v1346 = vsub.f32 %v1054, %v1339
        %s1347 = scalar_lea.vmem %s359, %s1341
        %1348 = vst.msk [vmem:[%s1347] sm:$0xff] %vm1070, %v1345
        %1349 = vst.msk [vmem:[%s1347 + $0x8] sm:$0xff] %vm1070, %v1346
        %1350 = vrot.lane.b32.xlu0 %v373, 112
        %v1351 = vpop.permute.xlu0 %1350
        %1352 = vrot.lane.b32.xlu0 %v374, 112
        %v1353 = vpop.permute.xlu0 %1352
        %v1356 = vmul.f32 %v1063, %v1351
        %v1357 = vmul.f32 %v1064, %v1353
        %s1358 = sadd.s32 %s1067, 16
        %s1359 = smul.u32 %s1358, 16
        %s1360 = scalar_lea.vmem %s343, %s1359
        %1361 = vst.msk [vmem:[%s1360] sm:$0xff] %vm1070, %v1356
        %1362 = vst.msk [vmem:[%s1360 + $0x8] sm:$0xff] %vm1070, %v1357
        %v1363 = vsub.f32 %v1063, %v1356
        %v1364 = vsub.f32 %v1064, %v1357
        %s1365 = scalar_lea.vmem %s359, %s1359
        %1366 = vst.msk [vmem:[%s1365] sm:$0xff] %vm1070, %v1363
        %1367 = vst.msk [vmem:[%s1365 + $0x8] sm:$0xff] %vm1070, %v1364
      $region37: #{local_forward.1} parent=31 // loop_footer
        %s368 = sadd.s32 1, %s364
      $region38: #{local_forward.1} parent=31 // loop_footer_branch
        %363 = sbr.rel target = $region34
      $region39: #{local_forward.1} parent=31 // loop_exit
        _
      %s1368 = smul.u32 289, %s23
      %s1369 = smul.u32 2, %s22
      %p1370 = scmp.lt.s32.totalorder %s21, 1
      %s1371 = scalar_select %p1370, %s21, 1
      %p1372 = scmp.lt.s32.totalorder %s1368, 288
      %s1373 = scalar_select %p1372, %s1368, 288
      %p1374 = scmp.lt.s32.totalorder %s1369, 1
      %s1375 = scalar_select %p1374, %s1369, 1
      %s1376 = smul.addr %s1373, 2
      %s1377 = sadd.s32 %s1375, %s1376
      %s1378 = smul.addr %s1371, 578
      %s1379 = sadd.s32 %s1377, %s1378
      %s1380 = smul.addr %s1379, 8
      %s1381 = scalar_lea.vmem %s3, %s1380
      %s1382 = smul.u32 289, %s23
      %s1383 = smul.u32 2, %s22
      %p1384 = scmp.lt.s32.totalorder %s21, 1
      %s1385 = scalar_select %p1384, %s21, 1
      %p1386 = scmp.lt.s32.totalorder %s1382, 288
      %s1387 = scalar_select %p1386, %s1382, 288
      %p1388 = scmp.lt.s32.totalorder %s1383, 1
      %s1389 = scalar_select %p1388, %s1383, 1
      %s1390 = smul.addr %s1387, 2
      %s1391 = sadd.s32 %s1389, %s1390
      %s1392 = smul.addr %s1385, 578
      %s1393 = sadd.s32 %s1391, %s1392
      %s1394 = smul.addr %s1393, 8
      %s1395 = scalar_lea.vmem %s4, %s1394
      // Predicated region
      $region40: #{local_forward.1} parent=31 // pred_check
        %p1396 = pneg %p141
      $region41: #{local_forward.1} parent=31 // pred_check_branch
        %1398 = sbr.rel (%p1396) target = $region43
      $region42: #{local_forward.1} parent=31 // pred_region
        %s1399 = smul.u32 289, %s23
        %s1400 = smul.u32 2, %s22
      $region43: #{local_forward.1} parent=31 // pred_fallthru
        _
      // Predicated region
      $region44: #{local_forward.1} parent=31 // pred_check
        %p1401 = pneg %p171
      $region45: #{local_forward.1} parent=31 // pred_check_branch
        %1403 = sbr.rel (%p1401) target = $region47
      $region46: #{local_forward.1} parent=31 // pred_region
        %s1404 = smul.u32 289, %s23
        %s1405 = smul.u32 2, %s22
      $region47: #{local_forward.1} parent=31 // pred_fallthru
        _
    $region32: #{local_forward.1} parent=5 // pred_fallthru
      _
    %p1406 = scmp.le.s32.totalorder 2, %s11
    // Predicated region
    $region48: #{local_forward.1} parent=5 // pred_check
      %p1407 = pneg %p1406
    $region49: #{local_forward.1} parent=5 // pred_check_branch
      %1409 = sbr.rel (%p1407) target = $region51
    $region50: #{local_forward.1} parent=5 // pred_region
      %s1410 = ssub.s32 %s11, 2
      // Predicated region
      $region52: #{local_forward.1} parent=50 // pred_check
        %p1411 = pneg %p147
      $region53: #{local_forward.1} parent=50 // pred_check_branch
        %1413 = sbr.rel (%p1411) target = $region55
      $region54: #{local_forward.1} parent=50 // pred_region
        %s1414 = smul.u32 289, %s26
        %s1415 = smul.u32 2, %s25
        %p1416 = scmp.lt.s32.totalorder %s24, 1
        %s1417 = scalar_select %p1416, %s24, 1
        %p1418 = scmp.lt.s32.totalorder %s1414, 288
        %s1419 = scalar_select %p1418, %s1414, 288
        %p1420 = scmp.lt.s32.totalorder %s1415, 1
        %s1421 = scalar_select %p1420, %s1415, 1
        %s1422 = smul.addr %s1419, 2
        %s1423 = sadd.s32 %s1421, %s1422
        %s1424 = smul.addr %s1417, 578
        %s1425 = sadd.s32 %s1423, %s1424
        %s1426 = smul.addr %s1425, 8
        %s1427 = scalar_lea.vmem %s3, %s1426
      $region55: #{local_forward.1} parent=50 // pred_fallthru
        _
      // Predicated region
      $region56: #{local_forward.1} parent=50 // pred_check
        %p1428 = pneg %p177
      $region57: #{local_forward.1} parent=50 // pred_check_branch
        %1430 = sbr.rel (%p1428) target = $region59
      $region58: #{local_forward.1} parent=50 // pred_region
        %s1431 = smul.u32 289, %s26
        %s1432 = smul.u32 2, %s25
        %p1433 = scmp.lt.s32.totalorder %s24, 1
        %s1434 = scalar_select %p1433, %s24, 1
        %p1435 = scmp.lt.s32.totalorder %s1431, 288
        %s1436 = scalar_select %p1435, %s1431, 288
        %p1437 = scmp.lt.s32.totalorder %s1432, 1
        %s1438 = scalar_select %p1437, %s1432, 1
        %s1439 = smul.addr %s1436, 2
        %s1440 = sadd.s32 %s1438, %s1439
        %s1441 = smul.addr %s1434, 578
        %s1442 = sadd.s32 %s1440, %s1441
        %s1443 = smul.addr %s1442, 8
        %s1444 = scalar_lea.vmem %s4, %s1443
      $region59: #{local_forward.1} parent=50 // pred_fallthru
        _
    $region51: #{local_forward.1} parent=5 // pred_fallthru
      _
  $region6: #{local_forward.1} parent=0 // loop_footer
    %s15 = sadd.s32 1, %s11
  $region7: #{local_forward.1} parent=0 // loop_footer_branch
    %10 = sbr.rel target = $region3
  $region8: #{local_forward.1} parent=0 // loop_exit
    _

</llo_original>
